<compile_context>
chip_gen: v7x
topology: tpu7x:2x2x1
jax: 0.10.0
libtpu: 0.0.40
codegen_flags: <defaults>
</compile_context>

<pallas_src>
import math
import functools

import jax
import jax.numpy as jnp
from jax.experimental import pallas as pl
from jax.experimental.pallas import tpu as pltpu


# ---------------------------------------------------------------------------
# Pass 1: conv (folded-K matmul) + per-tile BN partial statistics
# ---------------------------------------------------------------------------
def _conv_stats_kernel(xp_ref, w_ref, yconv_ref, mean_ref, m2_ref, *,
                       stride, KH, KW, Ho, Wo):
    """One grid step = one image.

    xp_ref    : (1, Cin, Hp, Wp) f32   spatially padded input image
    w_ref     : (Cout, KH*KW*Cin) bf16 flattened conv weight
    yconv_ref : (1, Cout, Ho*Wo) f32   pre-BN conv output (lane-dense)
    mean_ref  : (1, Cout, 1) f32       per-image per-channel mean
    m2_ref    : (1, Cout, 1) f32       per-image per-channel sum of sq. devs
    """
    Cin = xp_ref.shape[1]
    M = Ho * Wo

    xp = xp_ref[0]                                     # (Cin, Hp, Wp)

    # In-kernel im2col: fold the KH*KW taps into the contraction dimension so
    # the MXU sees one matmul with K = KH*KW*Cin instead of KH*KW tiny dots.
    taps = []
    for dy in range(KH):
        for dx in range(KW):
            if stride == 1:
                sl = xp[:, dy:dy + Ho, dx:dx + Wo]                  # contiguous
            else:
                sl = xp[:,
                        dy:dy + (Ho - 1) * stride + 1:stride,
                        dx:dx + (Wo - 1) * stride + 1:stride]
            taps.append(sl.reshape(Cin, M))
    patch = jnp.concatenate(taps, axis=0).astype(jnp.bfloat16)      # (K, M)

    # bf16 MXU matmul, f32 accumulation.  Result is (Cout, M): the output
    # lane axis is Ho*Wo, so the store below is lane-dense.
    acc = jnp.dot(w_ref[...], patch,
                  preferred_element_type=jnp.float32)               # (Cout, M)

    yconv_ref[0] = acc

    # Per-tile BN partial stats (mean + centered sum of squares).  Tiles are
    # combined in the wrapper with Chan's parallel update, which avoids the
    # E[x^2] - mean^2 cancellation issue.
    mu = jnp.mean(acc, axis=1, keepdims=True)                       # (Cout, 1)
    mean_ref[0] = mu
    m2_ref[0] = jnp.sum((acc - mu) * (acc - mu), axis=1, keepdims=True)


# ---------------------------------------------------------------------------
# Pass 2: normalize + (post-BN) bias + ReLU
# ---------------------------------------------------------------------------
def _bn_bias_relu_kernel(y_ref, scale_ref, shift_ref, o_ref):
    """y * scale + shift, then ReLU.  scale/shift fold the BN mean/var and the
    conv bias (bias is added AFTER batchnorm in the PyTorch module)."""
    y = y_ref[0]                                       # (Cout, M) f32
    o_ref[0] = jnp.maximum(y * scale_ref[...] + shift_ref[...], 0.0)


# ---------------------------------------------------------------------------
# Wrapper
# ---------------------------------------------------------------------------
def conv_block_forward(x_nchw, weight, bias=None, *, stride=1, padding=None,
                       bn=True, eps=1e-5):
    """Forward pass of the Conv block.

    x_nchw : (N, Cin, H, W) float32 (NCHW, PyTorch convention)
    weight : (Cout, Cin, KH, KW)
    bias   : (Cout,) or None
    returns (N, Cout, Ho, Wo) float32 (NCHW)
    """
    N, Cin, H, W = x_nchw.shape
    Cout, Cin_w, KH, KW = weight.shape
    assert Cin_w == Cin
    if padding is None:
        padding = (KH // 2, KW // 2)
    ph, pw = padding

    Ho = (H + 2 * ph - KH) // stride + 1
    Wo = (W + 2 * pw - KW) // stride + 1
    M = Ho * Wo
    K = KH * KW * Cin
    Hp, Wp = H + 2 * ph, W + 2 * pw

    # Wrapper glue: ONE spatial pad (no layout transposes in or out).
    x_pad = jnp.pad(x_nchw.astype(jnp.float32),
                    ((0, 0), (0, 0), (ph, ph), (pw, pw)))
    # Flatten weight so index = dy*KW*Cin + dx*Cin + ci (matches patch order).
    w_flat = (jnp.transpose(weight, (0, 2, 3, 1))
              .reshape(Cout, K).astype(jnp.bfloat16))

    cparams = pltpu.CompilerParams(
        dimension_semantics=("parallel",),          # batch axis -> 2 TCs on v7x
        vmem_limit_bytes=32 * 1024 * 1024)          # explicit, safe on 64MiB v7x

    # ---------------- pass 1: conv + partial stats ----------------
    kernel1 = functools.partial(_conv_stats_kernel, stride=stride,
                                KH=KH, KW=KW, Ho=Ho, Wo=Wo)
    cost1 = pl.CostEstimate(
        flops=2 * N * M * K * Cout,
        transcendentals=0,
        bytes_accessed=int(x_pad.size * 4 + w_flat.size * 2 + N * Cout * M * 4))

    y_conv, part_mean, part_m2 = pl.pallas_call(
        kernel1,
        grid=(N,),
        out_shape=(
            jax.ShapeDtypeStruct((N, Cout, M), jnp.float32),
            jax.ShapeDtypeStruct((N, Cout, 1), jnp.float32),
            jax.ShapeDtypeStruct((N, Cout, 1), jnp.float32),
        ),
        in_specs=[
            pl.BlockSpec((1, Cin, Hp, Wp), lambda n: (n, 0, 0, 0)),
            pl.BlockSpec((Cout, K), lambda n: (0, 0)),
        ],
        out_specs=(
            pl.BlockSpec((1, Cout, M), lambda n: (n, 0, 0)),
            pl.BlockSpec((1, Cout, 1), lambda n: (n, 0, 0)),
            pl.BlockSpec((1, Cout, 1), lambda n: (n, 0, 0)),
        ),
        compiler_params=cparams,
        cost_estimate=cost1,
    )(x_pad, w_flat)

    # ---------------- BN finalize (tiny (N, Cout) arrays) ----------------
    bias_f = None if bias is None else bias.astype(jnp.float32).reshape(Cout)
    if bn:
        means = part_mean[:, :, 0]               # (N, Cout) per-image means
        m2s = part_m2[:, :, 0]                   # (N, Cout) per-image M2
        mean = jnp.mean(means, axis=0)           # equal counts per tile
        m2_tot = jnp.sum(m2s, axis=0) + M * jnp.sum((means - mean) ** 2, axis=0)
        var = m2_tot / (N * M)                   # biased variance (training BN)
        scale = jax.lax.rsqrt(var + eps)
        shift = -mean * scale
    else:
        scale = jnp.ones((Cout,), jnp.float32)
        shift = jnp.zeros((Cout,), jnp.float32)
    if bias_f is not None:
        shift = shift + bias_f                   # conv bias added AFTER BN

    # ---------------- pass 2: normalize + bias + ReLU ----------------
    cost2 = pl.CostEstimate(flops=3 * N * Cout * M, transcendentals=0,
                            bytes_accessed=int(2 * N * Cout * M * 4))
    y = pl.pallas_call(
        _bn_bias_relu_kernel,
        grid=(N,),
        out_shape=jax.ShapeDtypeStruct((N, Cout, M), jnp.float32),
        in_specs=[
            pl.BlockSpec((1, Cout, M), lambda n: (n, 0, 0)),
            pl.BlockSpec((Cout, 1), lambda n: (0, 0)),
            pl.BlockSpec((Cout, 1), lambda n: (0, 0)),
        ],
        out_specs=pl.BlockSpec((1, Cout, M), lambda n: (n, 0, 0)),
        compiler_params=cparams,
        cost_estimate=cost2,
    )(y_conv, scale.reshape(Cout, 1), shift.reshape(Cout, 1))

    # (N, Cout, Ho*Wo) -> (N, Cout, Ho, Wo): contiguous reshape, already NCHW.
    return y.reshape(N, Cout, Ho, Wo)


# ---------------------------------------------------------------------------
# Param init mirroring Conv.reset_parameters: U(-stdv, stdv)
# ---------------------------------------------------------------------------
def init_conv_params(key, in_channels, out_channels, kernel_size=(3, 3)):
    kh, kw = kernel_size
    n = in_channels * kh * kw
    stdv = 1.0 / math.sqrt(n)
    kw_key, kb_key = jax.random.split(key)
    weight = jax.random.uniform(
        kw_key, (out_channels, in_channels, kh, kw),
        minval=-stdv, maxval=stdv, dtype=jnp.float32)
    bias = jax.random.uniform(
        kb_key, (out_channels,), minval=-stdv, maxval=stdv, dtype=jnp.float32)
    return weight, bias


# ---------------------------------------------------------------------------
# Pure-JAX f32 reference of the PyTorch module (for a sanity check)
# ---------------------------------------------------------------------------
def _reference_forward(x, weight, bias, *, stride, padding, eps):
    y = jax.lax.conv_general_dilated(
        x, weight, window_strides=(stride, stride),
        padding=[(padding[0], padding[0]), (padding[1], padding[1])],
        dimension_numbers=("NCHW", "OIHW", "NCHW"))
    mean = jnp.mean(y, axis=(0, 2, 3), keepdims=True)
    var = jnp.mean((y - mean) ** 2, axis=(0, 2, 3), keepdims=True)
    y = (y - mean) * jax.lax.rsqrt(var + eps)
    y = y + bias.reshape(1, -1, 1, 1)
    return jnp.maximum(y, 0.0)


if __name__ == "__main__":
    key = jax.random.PRNGKey(0)
    x_key, p_key = jax.random.split(key)

    N, Cin, Cout, H, W = 2, 4, 8, 16, 16
    x = jax.random.normal(x_key, (N, Cin, H, W), dtype=jnp.float32)
    weight, bias = init_conv_params(p_key, Cin, Cout, kernel_size=(3, 3))

    fwd = jax.jit(functools.partial(conv_block_forward, stride=1))
    y = jax.block_until_ready(fwd(x, weight, bias))

    assert y.shape == (N, Cout, H, W), y.shape
    assert bool(jnp.all(y >= 0.0))                 # ReLU output is non-negative
    assert bool(jnp.all(jnp.isfinite(y)))

    # Loose-tolerance check vs an f32 reference (kernel matmul runs in bf16).
    y_ref = _reference_forward(x, weight, bias, stride=1, padding=(1, 1),
                               eps=1e-5)
    max_err = float(jnp.max(jnp.abs(y - y_ref)))
    assert max_err < 0.12, f"max abs error vs reference: {max_err}"

    print("KERNEL_OK")
</pallas_src>

<mosaic_0001>
module attributes {stable_mosaic.version = 11 : i64} {
  func.func @_conv_stats_kernel(%arg0: i32, %arg1: memref<1x4x18x18xf32, #tpu.memory_space<vmem>>, %arg2: memref<8x36xbf16, #tpu.memory_space<vmem>>, %arg3: memref<1x8x256xf32, #tpu.memory_space<vmem>>, %arg4: memref<1x8x1xf32, #tpu.memory_space<vmem>>, %arg5: memref<1x8x1xf32, #tpu.memory_space<vmem>>) attributes {dimension_semantics = [#tpu.dimension_semantics<parallel>], iteration_bounds = array<i64: 2>, scalar_prefetch = 0 : i64, scratch_operands = 0 : i64, tpu.core_type = #tpu.core_type<tc>, window_params = [{transform_indices = @transform_0, window_bounds = array<i64: 1, 4, 18, 18>}, {pipeline_mode = #tpu.pipeline_mode<synchronous>, transform_indices = @transform_1, window_bounds = array<i64: 8, 36>}, {transform_indices = @transform_2, window_bounds = array<i64: 1, 8, 256>}, {transform_indices = @transform_3, window_bounds = array<i64: 1, 8, 1>}, {transform_indices = @transform_4, window_bounds = array<i64: 1, 8, 1>}]} {
    %c0 = arith.constant 0 : index
    %c0_0 = arith.constant 0 : index
    %c0_1 = arith.constant 0 : index
    %c0_2 = arith.constant 0 : index
    %0 = vector.load %arg1[%c0, %c0_0, %c0_1, %c0_2] : memref<1x4x18x18xf32, #tpu.memory_space<vmem>>, vector<1x4x18x18xf32>
    %1 = vector.shape_cast %0 : vector<1x4x18x18xf32> to vector<4x18x18xf32>
    %2 = vector.extract_strided_slice %1 {offsets = [0, 0, 0], sizes = [4, 16, 16], strides = [1, 1, 1]} : vector<4x18x18xf32> to vector<4x16x16xf32>
    %3 = vector.shape_cast %2 : vector<4x16x16xf32> to vector<4x256xf32>
    %4 = vector.extract_strided_slice %1 {offsets = [0, 0, 1], sizes = [4, 16, 16], strides = [1, 1, 1]} : vector<4x18x18xf32> to vector<4x16x16xf32>
    %5 = vector.shape_cast %4 : vector<4x16x16xf32> to vector<4x256xf32>
    %6 = vector.extract_strided_slice %1 {offsets = [0, 0, 2], sizes = [4, 16, 16], strides = [1, 1, 1]} : vector<4x18x18xf32> to vector<4x16x16xf32>
    %7 = vector.shape_cast %6 : vector<4x16x16xf32> to vector<4x256xf32>
    %8 = vector.extract_strided_slice %1 {offsets = [0, 1, 0], sizes = [4, 16, 16], strides = [1, 1, 1]} : vector<4x18x18xf32> to vector<4x16x16xf32>
    %9 = vector.shape_cast %8 : vector<4x16x16xf32> to vector<4x256xf32>
    %10 = vector.extract_strided_slice %1 {offsets = [0, 1, 1], sizes = [4, 16, 16], strides = [1, 1, 1]} : vector<4x18x18xf32> to vector<4x16x16xf32>
    %11 = vector.shape_cast %10 : vector<4x16x16xf32> to vector<4x256xf32>
    %12 = vector.extract_strided_slice %1 {offsets = [0, 1, 2], sizes = [4, 16, 16], strides = [1, 1, 1]} : vector<4x18x18xf32> to vector<4x16x16xf32>
    %13 = vector.shape_cast %12 : vector<4x16x16xf32> to vector<4x256xf32>
    %14 = vector.extract_strided_slice %1 {offsets = [0, 2, 0], sizes = [4, 16, 16], strides = [1, 1, 1]} : vector<4x18x18xf32> to vector<4x16x16xf32>
    %15 = vector.shape_cast %14 : vector<4x16x16xf32> to vector<4x256xf32>
    %16 = vector.extract_strided_slice %1 {offsets = [0, 2, 1], sizes = [4, 16, 16], strides = [1, 1, 1]} : vector<4x18x18xf32> to vector<4x16x16xf32>
    %17 = vector.shape_cast %16 : vector<4x16x16xf32> to vector<4x256xf32>
    %18 = vector.extract_strided_slice %1 {offsets = [0, 2, 2], sizes = [4, 16, 16], strides = [1, 1, 1]} : vector<4x18x18xf32> to vector<4x16x16xf32>
    %19 = vector.shape_cast %18 : vector<4x16x16xf32> to vector<4x256xf32>
    %20 = tpu.concatenate %3, %5, %7, %9, %11, %13, %15, %17, %19 in 0 : vector<4x256xf32>, vector<4x256xf32>, vector<4x256xf32>, vector<4x256xf32>, vector<4x256xf32>, vector<4x256xf32>, vector<4x256xf32>, vector<4x256xf32>, vector<4x256xf32> -> vector<36x256xf32>
    %21 = arith.truncf %20 : vector<36x256xf32> to vector<36x256xbf16>
    %c0_3 = arith.constant 0 : index
    %c0_4 = arith.constant 0 : index
    %22 = vector.load %arg2[%c0_3, %c0_4] : memref<8x36xbf16, #tpu.memory_space<vmem>>, vector<8x36xbf16>
    %cst = arith.constant dense<0.000000e+00> : vector<8x256xf32>
    %23 = tpu.matmul %22, %21, %cst {dimension_numbers = #tpu.dot_dimension_numbers<[1], [0], [0], [1], [0, 0, 1, 1], [], []>} : vector<8x36xbf16>, vector<36x256xbf16>, vector<8x256xf32> -> vector<8x256xf32>
    %c0_5 = arith.constant 0 : index
    %c0_6 = arith.constant 0 : index
    %c0_7 = arith.constant 0 : index
    %24 = vector.load %arg3[%c0_5, %c0_6, %c0_7] : memref<1x8x256xf32, #tpu.memory_space<vmem>>, vector<1x8x256xf32>
    %25 = vector.shape_cast %24 : vector<1x8x256xf32> to vector<8x256xf32>
    %26 = vector.shape_cast %23 : vector<8x256xf32> to vector<1x8x256xf32>
    tpu.vector_store %arg3[%c0_5, %c0_6, %c0_7], %26 {strides = array<i32>} : memref<1x8x256xf32, #tpu.memory_space<vmem>>, vector<1x8x256xf32>,
    %cst_8 = arith.constant dense<0.000000e+00> : vector<8xf32>
    %27 = vector.multi_reduction <add>, %23, %cst_8 [1] : vector<8x256xf32> to vector<8xf32>
    %28 = vector.shape_cast %27 : vector<8xf32> to vector<8x1xf32>
    %cst_9 = arith.constant 2.560000e+02 : f32
    %29 = vector.broadcast %cst_9 : f32 to vector<8x1xf32>
    %30 = arith.divf %28, %29 : vector<8x1xf32>
    %c0_10 = arith.constant 0 : index
    %c0_11 = arith.constant 0 : index
    %c0_12 = arith.constant 0 : index
    %31 = vector.load %arg4[%c0_10, %c0_11, %c0_12] : memref<1x8x1xf32, #tpu.memory_space<vmem>>, vector<1x8x1xf32>
    %32 = vector.shape_cast %31 : vector<1x8x1xf32> to vector<8x1xf32>
    %33 = vector.shape_cast %30 : vector<8x1xf32> to vector<1x8x1xf32>
    tpu.vector_store %arg4[%c0_10, %c0_11, %c0_12], %33 {strides = array<i32>} : memref<1x8x1xf32, #tpu.memory_space<vmem>>, vector<1x8x1xf32>,
    %34 = vector.broadcast %30 : vector<8x1xf32> to vector<8x256xf32>
    %35 = arith.subf %23, %34 : vector<8x256xf32>
    %36 = vector.broadcast %30 : vector<8x1xf32> to vector<8x256xf32>
    %37 = arith.subf %23, %36 : vector<8x256xf32>
    %38 = arith.mulf %35, %37 : vector<8x256xf32>
    %cst_13 = arith.constant dense<0.000000e+00> : vector<8xf32>
    %39 = vector.multi_reduction <add>, %38, %cst_13 [1] : vector<8x256xf32> to vector<8xf32>
    %40 = vector.shape_cast %39 : vector<8xf32> to vector<8x1xf32>
    %c0_14 = arith.constant 0 : index
    %c0_15 = arith.constant 0 : index
    %c0_16 = arith.constant 0 : index
    %41 = vector.load %arg5[%c0_14, %c0_15, %c0_16] : memref<1x8x1xf32, #tpu.memory_space<vmem>>, vector<1x8x1xf32>
    %42 = vector.shape_cast %41 : vector<1x8x1xf32> to vector<8x1xf32>
    %43 = vector.shape_cast %40 : vector<8x1xf32> to vector<1x8x1xf32>
    tpu.vector_store %arg5[%c0_14, %c0_15, %c0_16], %43 {strides = array<i32>} : memref<1x8x1xf32, #tpu.memory_space<vmem>>, vector<1x8x1xf32>,
    return
  }
  func.func @transform_0(%arg0: i32) -> (i32, i32, i32, i32) {
    %c0_i32 = arith.constant 0 : i32
    %c0_i32_0 = arith.constant 0 : i32
    %c0_i32_1 = arith.constant 0 : i32
    %c0_i32_2 = arith.constant 0 : i32
    return %arg0, %c0_i32, %c0_i32_0, %c0_i32_1 : i32, i32, i32, i32
  }
  func.func @transform_1(%arg0: i32) -> (i32, i32) {
    %c0_i32 = arith.constant 0 : i32
    %c0_i32_0 = arith.constant 0 : i32
    %c0_i32_1 = arith.constant 0 : i32
    return %c0_i32, %c0_i32_0 : i32, i32
  }
  func.func @transform_2(%arg0: i32) -> (i32, i32, i32) {
    %c0_i32 = arith.constant 0 : i32
    %c0_i32_0 = arith.constant 0 : i32
    %c0_i32_1 = arith.constant 0 : i32
    return %arg0, %c0_i32, %c0_i32_0 : i32, i32, i32
  }
  func.func @transform_3(%arg0: i32) -> (i32, i32, i32) {
    %c0_i32 = arith.constant 0 : i32
    %c0_i32_0 = arith.constant 0 : i32
    %c0_i32_1 = arith.constant 0 : i32
    return %arg0, %c0_i32, %c0_i32_0 : i32, i32, i32
  }
  func.func @transform_4(%arg0: i32) -> (i32, i32, i32) {
    %c0_i32 = arith.constant 0 : i32
    %c0_i32_0 = arith.constant 0 : i32
    %c0_i32_1 = arith.constant 0 : i32
    return %arg0, %c0_i32, %c0_i32_0 : i32, i32, i32
  }
}

module attributes {stable_mosaic.version = 11 : i64} {
  func.func @_bn_bias_relu_kernel(%arg0: i32, %arg1: memref<1x8x256xf32, #tpu.memory_space<vmem>>, %arg2: memref<8x1xf32, #tpu.memory_space<vmem>>, %arg3: memref<8x1xf32, #tpu.memory_space<vmem>>, %arg4: memref<1x8x256xf32, #tpu.memory_space<vmem>>) attributes {dimension_semantics = [#tpu.dimension_semantics<parallel>], iteration_bounds = array<i64: 2>, scalar_prefetch = 0 : i64, scratch_operands = 0 : i64, tpu.core_type = #tpu.core_type<tc>, window_params = [{transform_indices = @transform_0, window_bounds = array<i64: 1, 8, 256>}, {pipeline_mode = #tpu.pipeline_mode<synchronous>, transform_indices = @transform_1, window_bounds = array<i64: 8, 1>}, {pipeline_mode = #tpu.pipeline_mode<synchronous>, transform_indices = @transform_2, window_bounds = array<i64: 8, 1>}, {transform_indices = @transform_3, window_bounds = array<i64: 1, 8, 256>}]} {
    %c0 = arith.constant 0 : index
    %c0_0 = arith.constant 0 : index
    %c0_1 = arith.constant 0 : index
    %0 = vector.load %arg1[%c0, %c0_0, %c0_1] : memref<1x8x256xf32, #tpu.memory_space<vmem>>, vector<1x8x256xf32>
    %1 = vector.shape_cast %0 : vector<1x8x256xf32> to vector<8x256xf32>
    %c0_2 = arith.constant 0 : index
    %c0_3 = arith.constant 0 : index
    %2 = vector.load %arg2[%c0_2, %c0_3] : memref<8x1xf32, #tpu.memory_space<vmem>>, vector<8x1xf32>
    %3 = vector.broadcast %2 : vector<8x1xf32> to vector<8x256xf32>
    %4 = arith.mulf %1, %3 : vector<8x256xf32>
    %c0_4 = arith.constant 0 : index
    %c0_5 = arith.constant 0 : index
    %5 = vector.load %arg3[%c0_4, %c0_5] : memref<8x1xf32, #tpu.memory_space<vmem>>, vector<8x1xf32>
    %6 = vector.broadcast %5 : vector<8x1xf32> to vector<8x256xf32>
    %7 = arith.addf %4, %6 : vector<8x256xf32>
    %cst = arith.constant 0.000000e+00 : f32
    %8 = vector.broadcast %cst : f32 to vector<8x256xf32>
    %9 = arith.maximumf %7, %8 : vector<8x256xf32>
    %c0_6 = arith.constant 0 : index
    %c0_7 = arith.constant 0 : index
    %c0_8 = arith.constant 0 : index
    %10 = vector.load %arg4[%c0_6, %c0_7, %c0_8] : memref<1x8x256xf32, #tpu.memory_space<vmem>>, vector<1x8x256xf32>
    %11 = vector.shape_cast %10 : vector<1x8x256xf32> to vector<8x256xf32>
    %12 = vector.shape_cast %9 : vector<8x256xf32> to vector<1x8x256xf32>
    tpu.vector_store %arg4[%c0_6, %c0_7, %c0_8], %12 {strides = array<i32>} : memref<1x8x256xf32, #tpu.memory_space<vmem>>, vector<1x8x256xf32>,
    return
  }
  func.func @transform_0(%arg0: i32) -> (i32, i32, i32) {
    %c0_i32 = arith.constant 0 : i32
    %c0_i32_0 = arith.constant 0 : i32
    %c0_i32_1 = arith.constant 0 : i32
    return %arg0, %c0_i32, %c0_i32_0 : i32, i32, i32
  }
  func.func @transform_1(%arg0: i32) -> (i32, i32) {
    %c0_i32 = arith.constant 0 : i32
    %c0_i32_0 = arith.constant 0 : i32
    %c0_i32_1 = arith.constant 0 : i32
    return %c0_i32, %c0_i32_0 : i32, i32
  }
  func.func @transform_2(%arg0: i32) -> (i32, i32) {
    %c0_i32 = arith.constant 0 : i32
    %c0_i32_0 = arith.constant 0 : i32
    %c0_i32_1 = arith.constant 0 : i32
    return %c0_i32, %c0_i32_0 : i32, i32
  }
  func.func @transform_3(%arg0: i32) -> (i32, i32, i32) {
    %c0_i32 = arith.constant 0 : i32
    %c0_i32_0 = arith.constant 0 : i32
    %c0_i32_1 = arith.constant 0 : i32
    return %arg0, %c0_i32, %c0_i32_0 : i32, i32, i32
  }
}

</mosaic_0001>

<llo_original>
// kernel: conv_block_forward.3
$region0: #{conv_block_forward.3}
  #allocation0 [shape = 'u32[]', space=smem, size = 0x4, offset = 0x4, fixed_abs, tag = 'smem constant byte address 0x4 - core index']
  #allocation1 [shape = 'u32[144,128]{1,0:T(1,128)}', space=vmem, size = 0x12000, scoped, tag = 'internal scratch']
  %s0 = inlined_call_operand.vmem [shape: f32[2,8,256], index: 0, kind: input, shape index: {}]
  %s1 = inlined_call_operand.vmem [shape: f32[8,1], index: 1, kind: input, shape index: {}]
  %s2 = inlined_call_operand.vmem [shape: f32[8,1], index: 2, kind: input, shape index: {}]
  %s3 = inlined_call_operand.vmem [shape: f32[2,8,256], index: 3, kind: output, shape index: {}]
  %s4 = sld [smem:[#allocation0]]
  $region45: #{conv_block_forward.3} parent=0
    _
  %s6 = ssub.s32 1, %s4
  %s7 = scalar_select 0, %s6, %s4
  loop: start=0, step=1, limit=4
  $region2: #{conv_block_forward.3} parent=0 // loop_pre_header
    _
  $region3: #{conv_block_forward.3} parent=0 // loop_header
    %s9 = sphi 0, %s13
    %p10 = scmp.ge.s32.totalorder %s9, 4
    %s19 = sphi 0, %s21
    %s22 = sphi 0, %s19
    %s23 = sphi 0, %s22
    %s39 = sphi 0, %s23
    %s43 = sphi 0, %s43
    %s45 = sphi 0, %s43
    %s46 = sphi 0, %s45
    %s60 = sphi 0, %s46
    %s64 = sphi 0, %s64
    %s66 = sphi 0, %s64
    %s67 = sphi 0, %s66
    %s81 = sphi 0, %s67
    %s87 = sphi 0, %s89
    %s90 = sphi 0, %s87
    %s91 = sphi 0, %s90
    %s107 = sphi 0, %s91
  $region4: #{conv_block_forward.3} parent=0 // loop_header_branch
    %12 = sbr.rel (%p10) target = $region8
  $region5: #{conv_block_forward.3} parent=0 // loop_body
    %s14 = ssub.s32 %s9, 1
    %s15 = ssub.s32 %s9, 2
    %s16 = sadd.s32 %s9, 1
    %s17 = ssub.s32 %s9, %s16
    %p18 = scmp.eq.s32.totalorder %s17, 0
    %s20 = sadd.s32 %s19, 1
    %s21 = scalar_select %p18, %s19, %s20
    %p24 = pneg %p18
    %p25 = scmp.eq.s32.totalorder %s9, 1
    %p26 = por %p24, %p25
    %p27 = scmp.ne.s32.totalorder %s19, %s22
    %p28 = scmp.eq.s32.totalorder %s9, 0
    %p29 = por %p27, %p28
    %p30 = scmp.ne.s32.totalorder %s19, %s22
    %p31 = scmp.eq.s32.totalorder %s14, 1
    %p32 = por %p30, %p31
    %p33 = scmp.ne.s32.totalorder %s22, %s23
    %p34 = scmp.eq.s32.totalorder %s14, 0
    %p35 = por %p33, %p34
    %p36 = scmp.ne.s32.totalorder %s22, %s23
    %p37 = scmp.eq.s32.totalorder %s15, 1
    %p38 = por %p36, %p37
    %p40 = scmp.ne.s32.totalorder %s23, %s39
    %p41 = scmp.eq.s32.totalorder %s15, 0
    %p42 = por %p40, %p41
    %s44 = sadd.s32 %s43, 1
    %p47 = scmp.eq.s32.totalorder %s9, 1
    %p48 = scmp.ne.s32.totalorder %s43, %s45
    %p49 = scmp.eq.s32.totalorder %s9, 0
    %p50 = por %p48, %p49
    %p51 = scmp.ne.s32.totalorder %s43, %s45
    %p52 = scmp.eq.s32.totalorder %s14, 1
    %p53 = por %p51, %p52
    %p54 = scmp.ne.s32.totalorder %s45, %s46
    %p55 = scmp.eq.s32.totalorder %s14, 0
    %p56 = por %p54, %p55
    %p57 = scmp.ne.s32.totalorder %s45, %s46
    %p58 = scmp.eq.s32.totalorder %s15, 1
    %p59 = por %p57, %p58
    %p61 = scmp.ne.s32.totalorder %s46, %s60
    %p62 = scmp.eq.s32.totalorder %s15, 0
    %p63 = por %p61, %p62
    %s65 = sadd.s32 %s64, 1
    %p68 = scmp.eq.s32.totalorder %s9, 1
    %p69 = scmp.ne.s32.totalorder %s64, %s66
    %p70 = scmp.eq.s32.totalorder %s9, 0
    %p71 = por %p69, %p70
    %p72 = scmp.ne.s32.totalorder %s64, %s66
    %p73 = scmp.eq.s32.totalorder %s14, 1
    %p74 = por %p72, %p73
    %p75 = scmp.ne.s32.totalorder %s66, %s67
    %p76 = scmp.eq.s32.totalorder %s14, 0
    %p77 = por %p75, %p76
    %p78 = scmp.ne.s32.totalorder %s66, %s67
    %p79 = scmp.eq.s32.totalorder %s15, 1
    %p80 = por %p78, %p79
    %p82 = scmp.ne.s32.totalorder %s67, %s81
    %p83 = scmp.eq.s32.totalorder %s15, 0
    %p84 = por %p82, %p83
    %s85 = ssub.s32 %s9, %s16
    %p86 = scmp.eq.s32.totalorder %s85, 0
    %s88 = sadd.s32 %s87, 1
    %s89 = scalar_select %p86, %s87, %s88
    %p92 = pneg %p86
    %p93 = scmp.eq.s32.totalorder %s9, 1
    %p94 = por %p92, %p93
    %p95 = scmp.ne.s32.totalorder %s87, %s90
    %p96 = scmp.eq.s32.totalorder %s9, 0
    %p97 = por %p95, %p96
    %p98 = scmp.ne.s32.totalorder %s87, %s90
    %p99 = scmp.eq.s32.totalorder %s14, 1
    %p100 = por %p98, %p99
    %p101 = scmp.ne.s32.totalorder %s90, %s91
    %p102 = scmp.eq.s32.totalorder %s14, 0
    %p103 = por %p101, %p102
    %p104 = scmp.ne.s32.totalorder %s90, %s91
    %p105 = scmp.eq.s32.totalorder %s15, 1
    %p106 = por %p104, %p105
    %p108 = scmp.ne.s32.totalorder %s91, %s107
    %p109 = scmp.eq.s32.totalorder %s15, 0
    %p110 = por %p108, %p109
    %p111 = scmp.le.s32.totalorder 1, %s9
    %p112 = scmp.lt.s32.totalorder %s9, 3
    %p113 = pnand %p111, %p112
    %p114 = pneg %p113
    // Predicated region
    $region9: #{conv_block_forward.3} parent=5 // pred_check
      _
    $region10: #{conv_block_forward.3} parent=5 // pred_check_branch
      %116 = sbr.rel (%p113) target = $region12
    $region11: #{conv_block_forward.3} parent=5 // pred_region
      %s117 = ssub.s32 %s9, 1
      // Predicated region
      $region13: #{conv_block_forward.3} parent=11 // pred_check
        %p118 = pneg %p56
      $region14: #{conv_block_forward.3} parent=11 // pred_check_branch
        %120 = sbr.rel (%p118) target = $region16
      $region15: #{conv_block_forward.3} parent=11 // pred_region
        _
      $region16: #{conv_block_forward.3} parent=11 // pred_fallthru
        _
      // Predicated region
      $region17: #{conv_block_forward.3} parent=11 // pred_check
        %p121 = pneg %p77
      $region18: #{conv_block_forward.3} parent=11 // pred_check_branch
        %123 = sbr.rel (%p121) target = $region20
      $region19: #{conv_block_forward.3} parent=11 // pred_region
        _
      $region20: #{conv_block_forward.3} parent=11 // pred_fallthru
        _
    $region12: #{conv_block_forward.3} parent=5 // pred_fallthru
      _
    %p124 = scmp.lt.s32.totalorder %s9, 2
    // Predicated region
    $region21: #{conv_block_forward.3} parent=5 // pred_check
      %p125 = pneg %p124
    $region22: #{conv_block_forward.3} parent=5 // pred_check_branch
      %127 = sbr.rel (%p125) target = $region24
    $region23: #{conv_block_forward.3} parent=5 // pred_region
      // Predicated region
      $region25: #{conv_block_forward.3} parent=23 // pred_check
        %p128 = pneg %p29
      $region26: #{conv_block_forward.3} parent=23 // pred_check_branch
        %130 = sbr.rel (%p128) target = $region28
      $region27: #{conv_block_forward.3} parent=23 // pred_region
        %p131 = scmp.lt.s32.totalorder %s9, 1
        %s132 = scalar_select %p131, %s9, 1
        %s133 = smul.addr %s132, 2
        %s134 = smul.addr %s133, 8
        %s135 = scalar_lea.vmem %s0, %s134
      $region28: #{conv_block_forward.3} parent=23 // pred_fallthru
        _
    $region24: #{conv_block_forward.3} parent=5 // pred_fallthru
      _
    %p136 = scmp.le.s32.totalorder 1, %s9
    %p137 = scmp.lt.s32.totalorder %s9, 3
    %p138 = pnand %p136, %p137
    %p139 = pneg %p138
    // Predicated region
    $region29: #{conv_block_forward.3} parent=5 // pred_check
      _
    $region30: #{conv_block_forward.3} parent=5 // pred_check_branch
      %141 = sbr.rel (%p138) target = $region32
    $region31: #{conv_block_forward.3} parent=5 // pred_region
      %s142 = ssub.s32 %s9, 1
      %p143 = scmp.lt.s32.totalorder %s14, 1
      %s144 = scalar_select %p143, %s14, 1
      %s145 = smul.addr %s144, 2
      %s146 = smul.addr %s145, 8
      %s147 = scalar_lea.vmem %s0, %s146
      %p148 = pneg %p35
      %p149 = pneg %p32
      %p150 = pneg %p56
      %p151 = pneg %p53
      %p152 = pneg %p77
      %p153 = pneg %p74
      %p154 = pneg %p103
      %p155 = pneg %p100
      %p156 = scmp.lt.s32.totalorder %s14, 1
      %s157 = scalar_select %p156, %s14, 1
      %s158 = smul.addr %s157, 2
      %s159 = smul.addr %s158, 8
      %s160 = scalar_lea.vmem %s3, %s159
      %p161 = scmp.lt.s32.totalorder %s14, 1
      %s162 = scalar_select %p161, %s14, 1
      %s163 = smul.addr %s162, 2
      %s164 = smul.addr %s163, 8
      %s165 = scalar_lea.vmem %s0, %s164
      %p166 = scmp.lt.s32.totalorder %s14, 1
      %s167 = scalar_select %p166, %s14, 1
      %s168 = smul.addr %s167, 2
      %s169 = smul.addr %s168, 8
      %s170 = scalar_lea.vmem %s3, %s169
      %v171 = vld [vmem:[%s165] sm:$0xff]
      %v172 = vld [vmem:[%s165 + $0x8] sm:$0xff]
      %v173 = vld [vmem:[%s1] sm:$0xff]
      %175 = vset.pattern.permute.xlu0 0
      %176 = vperm.xlu0 %175, %v173
      %v177 = vpop.permute.xlu0 %176
      %v179 = vmul.f32 %v171, %v177
      %v180 = vmul.f32 %v172, %v177
      %v181 = vld [vmem:[%s2] sm:$0xff]
      %183 = vset.pattern.permute.xlu0 0
      %184 = vperm.xlu0 %183, %v181
      %v185 = vpop.permute.xlu0 %184
      %v187 = vadd.f32 %v179, %v185
      %v188 = vadd.f32 %v180, %v185
      %v189 = vmax.f32 %v187, 0.0
      %v190 = vmax.f32 %v188, 0.0
      %191 = vst [vmem:[%s170] sm:$0xff] %v189
      %192 = vst [vmem:[%s170 + $0x8] sm:$0xff] %v190
      %p193 = scmp.lt.s32.totalorder %s14, 1
      %s194 = scalar_select %p193, %s14, 1
      %s195 = smul.addr %s194, 2
      %s196 = smul.addr %s195, 8
      %s197 = scalar_lea.vmem %s3, %s196
      // Predicated region
      $region33: #{conv_block_forward.3} parent=31 // pred_check
        %p198 = pneg %p100
      $region34: #{conv_block_forward.3} parent=31 // pred_check_branch
        %200 = sbr.rel (%p198) target = $region36
      $region35: #{conv_block_forward.3} parent=31 // pred_region
        _
      $region36: #{conv_block_forward.3} parent=31 // pred_fallthru
        _
    $region32: #{conv_block_forward.3} parent=5 // pred_fallthru
      _
    %p201 = scmp.le.s32.totalorder 2, %s9
    // Predicated region
    $region37: #{conv_block_forward.3} parent=5 // pred_check
      %p202 = pneg %p201
    $region38: #{conv_block_forward.3} parent=5 // pred_check_branch
      %204 = sbr.rel (%p202) target = $region40
    $region39: #{conv_block_forward.3} parent=5 // pred_region
      %s205 = ssub.s32 %s9, 2
      // Predicated region
      $region41: #{conv_block_forward.3} parent=39 // pred_check
        %p206 = pneg %p106
      $region42: #{conv_block_forward.3} parent=39 // pred_check_branch
        %208 = sbr.rel (%p206) target = $region44
      $region43: #{conv_block_forward.3} parent=39 // pred_region
        %p209 = scmp.lt.s32.totalorder %s15, 1
        %s210 = scalar_select %p209, %s15, 1
        %s211 = smul.addr %s210, 2
        %s212 = smul.addr %s211, 8
        %s213 = scalar_lea.vmem %s3, %s212
      $region44: #{conv_block_forward.3} parent=39 // pred_fallthru
        _
    $region40: #{conv_block_forward.3} parent=5 // pred_fallthru
      _
  $region6: #{conv_block_forward.3} parent=0 // loop_footer
    %s13 = sadd.s32 1, %s9
  $region7: #{conv_block_forward.3} parent=0 // loop_footer_branch
    %8 = sbr.rel target = $region3
  $region8: #{conv_block_forward.3} parent=0 // loop_exit
    _

// kernel: conv_block_forward.2
$region0: #{conv_block_forward.2}
  #allocation0 [shape = 'u32[]', space=smem, size = 0x4, offset = 0x4, fixed_abs, tag = 'smem constant byte address 0x4 - core index']
  #allocation1 [shape = 'u32[144,128]{1,0:T(1,128)}', space=vmem, size = 0x12000, scoped, tag = 'internal scratch']
  %s0 = inlined_call_operand.vmem [shape: f32[2,4,18,18], index: 0, kind: input, shape index: {}]
  %s1 = inlined_call_operand.vmem [shape: bf16[8,36], index: 1, kind: input, shape index: {}]
  %s2 = inlined_call_operand.vmem [shape: f32[2,8,256], index: 2, kind: output, shape index: {0}]
  %s3 = inlined_call_operand.vmem [shape: f32[2,8,1], index: 3, kind: output, shape index: {1}]
  %s4 = inlined_call_operand.vmem [shape: f32[2,8,1], index: 4, kind: output, shape index: {2}]
  %5 = xla_tuple %s2, %s3, %s4
  %s6 = sld [smem:[#allocation0]]
  $region57: #{conv_block_forward.2} parent=0
    _
  %s8 = ssub.s32 1, %s6
  %s9 = scalar_select 0, %s8, %s6
  loop: start=0, step=1, limit=4
  $region2: #{conv_block_forward.2} parent=0 // loop_pre_header
    _
  $region3: #{conv_block_forward.2} parent=0 // loop_header
    %s11 = sphi 0, %s15
    %p12 = scmp.ge.s32.totalorder %s11, 4
    %s21 = sphi 0, %s23
    %s24 = sphi 0, %s21
    %s25 = sphi 0, %s24
    %s41 = sphi 0, %s25
    %s45 = sphi 0, %s45
    %s47 = sphi 0, %s45
    %s48 = sphi 0, %s47
    %s62 = sphi 0, %s48
    %s68 = sphi 0, %s70
    %s71 = sphi 0, %s68
    %s72 = sphi 0, %s71
    %s88 = sphi 0, %s72
    %s94 = sphi 0, %s96
    %s97 = sphi 0, %s94
    %s98 = sphi 0, %s97
    %s114 = sphi 0, %s98
    %s120 = sphi 0, %s122
    %s123 = sphi 0, %s120
    %s124 = sphi 0, %s123
    %s140 = sphi 0, %s124
  $region4: #{conv_block_forward.2} parent=0 // loop_header_branch
    %14 = sbr.rel (%p12) target = $region8
  $region5: #{conv_block_forward.2} parent=0 // loop_body
    %s16 = ssub.s32 %s11, 1
    %s17 = ssub.s32 %s11, 2
    %s18 = sadd.s32 %s11, 1
    %s19 = ssub.s32 %s11, %s18
    %p20 = scmp.eq.s32.totalorder %s19, 0
    %s22 = sadd.s32 %s21, 1
    %s23 = scalar_select %p20, %s21, %s22
    %p26 = pneg %p20
    %p27 = scmp.eq.s32.totalorder %s11, 1
    %p28 = por %p26, %p27
    %p29 = scmp.ne.s32.totalorder %s21, %s24
    %p30 = scmp.eq.s32.totalorder %s11, 0
    %p31 = por %p29, %p30
    %p32 = scmp.ne.s32.totalorder %s21, %s24
    %p33 = scmp.eq.s32.totalorder %s16, 1
    %p34 = por %p32, %p33
    %p35 = scmp.ne.s32.totalorder %s24, %s25
    %p36 = scmp.eq.s32.totalorder %s16, 0
    %p37 = por %p35, %p36
    %p38 = scmp.ne.s32.totalorder %s24, %s25
    %p39 = scmp.eq.s32.totalorder %s17, 1
    %p40 = por %p38, %p39
    %p42 = scmp.ne.s32.totalorder %s25, %s41
    %p43 = scmp.eq.s32.totalorder %s17, 0
    %p44 = por %p42, %p43
    %s46 = sadd.s32 %s45, 1
    %p49 = scmp.eq.s32.totalorder %s11, 1
    %p50 = scmp.ne.s32.totalorder %s45, %s47
    %p51 = scmp.eq.s32.totalorder %s11, 0
    %p52 = por %p50, %p51
    %p53 = scmp.ne.s32.totalorder %s45, %s47
    %p54 = scmp.eq.s32.totalorder %s16, 1
    %p55 = por %p53, %p54
    %p56 = scmp.ne.s32.totalorder %s47, %s48
    %p57 = scmp.eq.s32.totalorder %s16, 0
    %p58 = por %p56, %p57
    %p59 = scmp.ne.s32.totalorder %s47, %s48
    %p60 = scmp.eq.s32.totalorder %s17, 1
    %p61 = por %p59, %p60
    %p63 = scmp.ne.s32.totalorder %s48, %s62
    %p64 = scmp.eq.s32.totalorder %s17, 0
    %p65 = por %p63, %p64
    %s66 = ssub.s32 %s11, %s18
    %p67 = scmp.eq.s32.totalorder %s66, 0
    %s69 = sadd.s32 %s68, 1
    %s70 = scalar_select %p67, %s68, %s69
    %p73 = pneg %p67
    %p74 = scmp.eq.s32.totalorder %s11, 1
    %p75 = por %p73, %p74
    %p76 = scmp.ne.s32.totalorder %s68, %s71
    %p77 = scmp.eq.s32.totalorder %s11, 0
    %p78 = por %p76, %p77
    %p79 = scmp.ne.s32.totalorder %s68, %s71
    %p80 = scmp.eq.s32.totalorder %s16, 1
    %p81 = por %p79, %p80
    %p82 = scmp.ne.s32.totalorder %s71, %s72
    %p83 = scmp.eq.s32.totalorder %s16, 0
    %p84 = por %p82, %p83
    %p85 = scmp.ne.s32.totalorder %s71, %s72
    %p86 = scmp.eq.s32.totalorder %s17, 1
    %p87 = por %p85, %p86
    %p89 = scmp.ne.s32.totalorder %s72, %s88
    %p90 = scmp.eq.s32.totalorder %s17, 0
    %p91 = por %p89, %p90
    %s92 = ssub.s32 %s11, %s18
    %p93 = scmp.eq.s32.totalorder %s92, 0
    %s95 = sadd.s32 %s94, 1
    %s96 = scalar_select %p93, %s94, %s95
    %p99 = pneg %p93
    %p100 = scmp.eq.s32.totalorder %s11, 1
    %p101 = por %p99, %p100
    %p102 = scmp.ne.s32.totalorder %s94, %s97
    %p103 = scmp.eq.s32.totalorder %s11, 0
    %p104 = por %p102, %p103
    %p105 = scmp.ne.s32.totalorder %s94, %s97
    %p106 = scmp.eq.s32.totalorder %s16, 1
    %p107 = por %p105, %p106
    %p108 = scmp.ne.s32.totalorder %s97, %s98
    %p109 = scmp.eq.s32.totalorder %s16, 0
    %p110 = por %p108, %p109
    %p111 = scmp.ne.s32.totalorder %s97, %s98
    %p112 = scmp.eq.s32.totalorder %s17, 1
    %p113 = por %p111, %p112
    %p115 = scmp.ne.s32.totalorder %s98, %s114
    %p116 = scmp.eq.s32.totalorder %s17, 0
    %p117 = por %p115, %p116
    %s118 = ssub.s32 %s11, %s18
    %p119 = scmp.eq.s32.totalorder %s118, 0
    %s121 = sadd.s32 %s120, 1
    %s122 = scalar_select %p119, %s120, %s121
    %p125 = pneg %p119
    %p126 = scmp.eq.s32.totalorder %s11, 1
    %p127 = por %p125, %p126
    %p128 = scmp.ne.s32.totalorder %s120, %s123
    %p129 = scmp.eq.s32.totalorder %s11, 0
    %p130 = por %p128, %p129
    %p131 = scmp.ne.s32.totalorder %s120, %s123
    %p132 = scmp.eq.s32.totalorder %s16, 1
    %p133 = por %p131, %p132
    %p134 = scmp.ne.s32.totalorder %s123, %s124
    %p135 = scmp.eq.s32.totalorder %s16, 0
    %p136 = por %p134, %p135
    %p137 = scmp.ne.s32.totalorder %s123, %s124
    %p138 = scmp.eq.s32.totalorder %s17, 1
    %p139 = por %p137, %p138
    %p141 = scmp.ne.s32.totalorder %s124, %s140
    %p142 = scmp.eq.s32.totalorder %s17, 0
    %p143 = por %p141, %p142
    %p144 = scmp.le.s32.totalorder 1, %s11
    %p145 = scmp.lt.s32.totalorder %s11, 3
    %p146 = pnand %p144, %p145
    %p147 = pneg %p146
    // Predicated region
    $region9: #{conv_block_forward.2} parent=5 // pred_check
      _
    $region10: #{conv_block_forward.2} parent=5 // pred_check_branch
      %149 = sbr.rel (%p146) target = $region12
    $region11: #{conv_block_forward.2} parent=5 // pred_region
      %s150 = ssub.s32 %s11, 1
      // Predicated region
      $region13: #{conv_block_forward.2} parent=11 // pred_check
        %p151 = pneg %p58
      $region14: #{conv_block_forward.2} parent=11 // pred_check_branch
        %153 = sbr.rel (%p151) target = $region16
      $region15: #{conv_block_forward.2} parent=11 // pred_region
        _
      $region16: #{conv_block_forward.2} parent=11 // pred_fallthru
        _
    $region12: #{conv_block_forward.2} parent=5 // pred_fallthru
      _
    %p154 = scmp.lt.s32.totalorder %s11, 2
    // Predicated region
    $region17: #{conv_block_forward.2} parent=5 // pred_check
      %p155 = pneg %p154
    $region18: #{conv_block_forward.2} parent=5 // pred_check_branch
      %157 = sbr.rel (%p155) target = $region20
    $region19: #{conv_block_forward.2} parent=5 // pred_region
      // Predicated region
      $region21: #{conv_block_forward.2} parent=19 // pred_check
        %p158 = pneg %p31
      $region22: #{conv_block_forward.2} parent=19 // pred_check_branch
        %160 = sbr.rel (%p158) target = $region24
      $region23: #{conv_block_forward.2} parent=19 // pred_region
        %p161 = scmp.lt.s32.totalorder %s11, 1
        %s162 = scalar_select %p161, %s11, 1
        %s163 = smul.addr %s162, 12
        %s164 = smul.addr %s163, 8
        %s165 = scalar_lea.vmem %s0, %s164
      $region24: #{conv_block_forward.2} parent=19 // pred_fallthru
        _
    $region20: #{conv_block_forward.2} parent=5 // pred_fallthru
      _
    %p166 = scmp.le.s32.totalorder 1, %s11
    %p167 = scmp.lt.s32.totalorder %s11, 3
    %p168 = pnand %p166, %p167
    %p169 = pneg %p168
    // Predicated region
    $region25: #{conv_block_forward.2} parent=5 // pred_check
      _
    $region26: #{conv_block_forward.2} parent=5 // pred_check_branch
      %171 = sbr.rel (%p168) target = $region28
    $region27: #{conv_block_forward.2} parent=5 // pred_region
      %s172 = ssub.s32 %s11, 1
      %p173 = scmp.lt.s32.totalorder %s16, 1
      %s174 = scalar_select %p173, %s16, 1
      %s175 = smul.addr %s174, 12
      %s176 = smul.addr %s175, 8
      %s177 = scalar_lea.vmem %s0, %s176
      %p178 = pneg %p37
      %p179 = pneg %p34
      %p180 = pneg %p58
      %p181 = pneg %p55
      %p182 = pneg %p84
      %p183 = pneg %p81
      %p184 = scmp.lt.s32.totalorder %s16, 1
      %s185 = scalar_select %p184, %s16, 1
      %s186 = smul.addr %s185, 2
      %s187 = smul.addr %s186, 8
      %s188 = scalar_lea.vmem %s2, %s187
      %p189 = pneg %p110
      %p190 = pneg %p107
      %p191 = scmp.lt.s32.totalorder %s16, 1
      %s192 = scalar_select %p191, %s16, 1
      %s193 = smul.addr %s192, 8
      %s194 = scalar_lea.vmem %s3, %s193
      %p195 = pneg %p136
      %p196 = pneg %p133
      %p197 = scmp.lt.s32.totalorder %s16, 1
      %s198 = scalar_select %p197, %s16, 1
      %s199 = smul.addr %s198, 8
      %s200 = scalar_lea.vmem %s4, %s199
      %p201 = scmp.lt.s32.totalorder %s16, 1
      %s202 = scalar_select %p201, %s16, 1
      %s203 = smul.addr %s202, 12
      %s204 = smul.addr %s203, 8
      %s205 = scalar_lea.vmem %s0, %s204
      %p206 = scmp.lt.s32.totalorder %s16, 1
      %s207 = scalar_select %p206, %s16, 1
      %s208 = smul.addr %s207, 2
      %s209 = smul.addr %s208, 8
      %s210 = scalar_lea.vmem %s2, %s209
      %p211 = scmp.lt.s32.totalorder %s16, 1
      %s212 = scalar_select %p211, %s16, 1
      %s213 = smul.addr %s212, 8
      %s214 = scalar_lea.vmem %s3, %s213
      %p215 = scmp.lt.s32.totalorder %s16, 1
      %s216 = scalar_select %p215, %s16, 1
      %s217 = smul.addr %s216, 8
      %s218 = scalar_lea.vmem %s4, %s217
      %v220 = vld [vmem:[%s205] sm:$0xff]
      %v221 = vld [vmem:[%s205 + $0x8] sm:$0xff]
      %v222 = vld [vmem:[%s205 + $0x10] sm:$0x3]
      %v223 = vld [vmem:[%s205 + $0x18] sm:$0xff]
      %v224 = vld [vmem:[%s205 + $0x20] sm:$0xff]
      %v225 = vld [vmem:[%s205 + $0x28] sm:$0x3]
      %v226 = vld [vmem:[%s205 + $0x30] sm:$0xff]
      %v227 = vld [vmem:[%s205 + $0x38] sm:$0xff]
      %v228 = vld [vmem:[%s205 + $0x40] sm:$0x3]
      %v229 = vld [vmem:[%s205 + $0x48] sm:$0xff]
      %v230 = vld [vmem:[%s205 + $0x50] sm:$0xff]
      %v231 = vld [vmem:[%s205 + $0x58] sm:$0x3]
      %v232 = vcombine.low %v220, %v226
      %v233 = vcombine.high %v220, %v226
      %v235 = vunpack.c.l.s4 1983009808
      %v236 = vunpack.c.0.s8 %v235
      %v237 = vlaneseq
      %v238 = vshrl.u32 %v237, 7
      %v239 = vsub.s32 %v236, %v238
      %v240 = vrot.slane %v232, %v239
      %v242 = vunpack.c.l.s4 1983009808
      %v243 = vunpack.c.0.s8 %v242
      %v244 = vlaneseq
      %v245 = vshrl.u32 %v244, 7
      %v246 = vsub.s32 %v243, %v245
      %v247 = vrot.slane %v233, %v246
      %v248 = vcombine.low %v223, %v229
      %v249 = vcombine.high %v223, %v229
      %v251 = vunpack.c.l.s4 1983009808
      %v252 = vunpack.c.0.s8 %v251
      %v253 = vlaneseq
      %v254 = vshrl.u32 %v253, 7
      %v255 = vsub.s32 %v252, %v254
      %v256 = vrot.slane %v248, %v255
      %v258 = vunpack.c.l.s4 1983009808
      %v259 = vunpack.c.0.s8 %v258
      %v260 = vlaneseq
      %v261 = vshrl.u32 %v260, 7
      %v262 = vsub.s32 %v259, %v261
      %v263 = vrot.slane %v249, %v262
      %v264 = vcombine.low %v240, %v256
      %v265 = vcombine.high %v240, %v256
      %v267 = vunpack.c.l.s4 1934713408
      %v268 = vunpack.c.0.s8 %v267
      %v269 = vlaneseq
      %v270 = vshrl.u32 %v269, 7
      %v271 = vsub.s32 %v268, %v270
      %v272 = vrot.slane %v264, %v271
      %v274 = vunpack.c.l.s4 1934713408
      %v275 = vunpack.c.0.s8 %v274
      %v276 = vlaneseq
      %v277 = vshrl.u32 %v276, 7
      %v278 = vsub.s32 %v275, %v277
      %v279 = vrot.slane %v265, %v278
      %v280 = vcombine.low %v247, %v263
      %v281 = vcombine.high %v247, %v263
      %v283 = vunpack.c.l.s4 1934713408
      %v284 = vunpack.c.0.s8 %v283
      %v285 = vlaneseq
      %v286 = vshrl.u32 %v285, 7
      %v287 = vsub.s32 %v284, %v286
      %v288 = vrot.slane %v280, %v287
      %v290 = vunpack.c.l.s4 1934713408
      %v291 = vunpack.c.0.s8 %v290
      %v292 = vlaneseq
      %v293 = vshrl.u32 %v292, 7
      %v294 = vsub.s32 %v291, %v293
      %v295 = vrot.slane %v281, %v294
      %v296 = vcombine.high %v272, 0.0
      %v297 = vcombine.high %v279, 0.0
      %v298 = vcombine.high %v288, 0.0
      %v299 = vcombine.high %v295, 0.0
      %v300 = vcombine.low %v221, %v227
      %v301 = vcombine.high %v221, %v227
      %v303 = vunpack.c.l.s4 1983009808
      %v304 = vunpack.c.0.s8 %v303
      %v305 = vlaneseq
      %v306 = vshrl.u32 %v305, 7
      %v307 = vsub.s32 %v304, %v306
      %v308 = vrot.slane %v300, %v307
      %v310 = vunpack.c.l.s4 1983009808
      %v311 = vunpack.c.0.s8 %v310
      %v312 = vlaneseq
      %v313 = vshrl.u32 %v312, 7
      %v314 = vsub.s32 %v311, %v313
      %v315 = vrot.slane %v301, %v314
      %v316 = vcombine.low %v224, %v230
      %v317 = vcombine.high %v224, %v230
      %v319 = vunpack.c.l.s4 1983009808
      %v320 = vunpack.c.0.s8 %v319
      %v321 = vlaneseq
      %v322 = vshrl.u32 %v321, 7
      %v323 = vsub.s32 %v320, %v322
      %v324 = vrot.slane %v316, %v323
      %v326 = vunpack.c.l.s4 1983009808
      %v327 = vunpack.c.0.s8 %v326
      %v328 = vlaneseq
      %v329 = vshrl.u32 %v328, 7
      %v330 = vsub.s32 %v327, %v329
      %v331 = vrot.slane %v317, %v330
      %v332 = vcombine.low %v308, %v324
      %v333 = vcombine.high %v308, %v324
      %v335 = vunpack.c.l.s4 1934713408
      %v336 = vunpack.c.0.s8 %v335
      %v337 = vlaneseq
      %v338 = vshrl.u32 %v337, 7
      %v339 = vsub.s32 %v336, %v338
      %v340 = vrot.slane %v332, %v339
      %v342 = vunpack.c.l.s4 1934713408
      %v343 = vunpack.c.0.s8 %v342
      %v344 = vlaneseq
      %v345 = vshrl.u32 %v344, 7
      %v346 = vsub.s32 %v343, %v345
      %v347 = vrot.slane %v333, %v346
      %v348 = vcombine.low %v315, %v331
      %v349 = vcombine.high %v315, %v331
      %v351 = vunpack.c.l.s4 1934713408
      %v352 = vunpack.c.0.s8 %v351
      %v353 = vlaneseq
      %v354 = vshrl.u32 %v353, 7
      %v355 = vsub.s32 %v352, %v354
      %v356 = vrot.slane %v348, %v355
      %v358 = vunpack.c.l.s4 1934713408
      %v359 = vunpack.c.0.s8 %v358
      %v360 = vlaneseq
      %v361 = vshrl.u32 %v360, 7
      %v362 = vsub.s32 %v359, %v361
      %v363 = vrot.slane %v349, %v362
      %v364 = vcombine.high %v340, 0.0
      %v365 = vcombine.high %v347, 0.0
      %v366 = vcombine.high %v356, 0.0
      %v367 = vcombine.high %v363, 0.0
      %369 = vrot.lane.b32.xlu0 %v296, 16
      %v370 = vpop.permute.xlu0 %369
      %373 = vrot.lane.b32.xlu0 %v279, 32
      %v374 = vpop.permute.xlu0 %373
      %377 = vrot.lane.b32.xlu0 %v297, 48
      %v378 = vpop.permute.xlu0 %377
      %381 = vrot.lane.b32.xlu0 %v288, 64
      %v382 = vpop.permute.xlu0 %381
      %385 = vrot.lane.b32.xlu0 %v298, 80
      %v386 = vpop.permute.xlu0 %385
      %389 = vrot.lane.b32.xlu0 %v295, 96
      %v390 = vpop.permute.xlu0 %389
      %393 = vrot.lane.b32.xlu0 %v299, 112
      %v394 = vpop.permute.xlu0 %393
      %397 = vrot.lane.b32.xlu0 %v364, 16
      %v398 = vpop.permute.xlu0 %397
      %401 = vrot.lane.b32.xlu0 %v347, 32
      %v402 = vpop.permute.xlu0 %401
      %405 = vrot.lane.b32.xlu0 %v365, 48
      %v406 = vpop.permute.xlu0 %405
      %409 = vrot.lane.b32.xlu0 %v356, 64
      %v410 = vpop.permute.xlu0 %409
      %413 = vrot.lane.b32.xlu0 %v366, 80
      %v414 = vpop.permute.xlu0 %413
      %417 = vrot.lane.b32.xlu0 %v363, 96
      %v418 = vpop.permute.xlu0 %417
      %421 = vrot.lane.b32.xlu0 %v367, 112
      %v422 = vpop.permute.xlu0 %421
      %vm424 = vcmask 130048
      %v425 = vsel %vm424, %v272, %v370
      %vm426 = vcmask 261120
      %v427 = vsel %vm426, %v425, %v374
      %vm428 = vcmask 392192
      %v429 = vsel %vm428, %v427, %v378
      %vm430 = vcmask 523264
      %v431 = vsel %vm430, %v429, %v382
      %vm432 = vcmask 654336
      %v433 = vsel %vm432, %v431, %v386
      %vm434 = vcmask 785408
      %v435 = vsel %vm434, %v433, %v390
      %vm436 = vcmask 916480
      %v437 = vsel %vm436, %v435, %v394
      %v438 = vsel %vm424, %v340, %v398
      %v439 = vsel %vm426, %v438, %v402
      %v440 = vsel %vm428, %v439, %v406
      %v441 = vsel %vm430, %v440, %v410
      %v442 = vsel %vm432, %v441, %v414
      %v443 = vsel %vm434, %v442, %v418
      %v444 = vsel %vm436, %v443, %v422
      %453 = vrot.lane.b32.xlu0 %v220, 127
      %v454 = vpop.permute.xlu0 %453
      %455 = vrot.lane.b32.xlu0 %v221, 127
      %v456 = vpop.permute.xlu0 %455
      %457 = vrot.lane.b32.xlu0 %v223, 127
      %v458 = vpop.permute.xlu0 %457
      %459 = vrot.lane.b32.xlu0 %v224, 127
      %v460 = vpop.permute.xlu0 %459
      %461 = vrot.lane.b32.xlu0 %v226, 127
      %v462 = vpop.permute.xlu0 %461
      %463 = vrot.lane.b32.xlu0 %v227, 127
      %v464 = vpop.permute.xlu0 %463
      %465 = vrot.lane.b32.xlu0 %v229, 127
      %v466 = vpop.permute.xlu0 %465
      %467 = vrot.lane.b32.xlu0 %v230, 127
      %v468 = vpop.permute.xlu0 %467
      %v477 = vcombine.low %v454, %v462
      %v478 = vcombine.high %v454, %v462
      %v480 = vunpack.c.l.s4 1983009808
      %v481 = vunpack.c.0.s8 %v480
      %v482 = vlaneseq
      %v483 = vshrl.u32 %v482, 7
      %v484 = vsub.s32 %v481, %v483
      %v485 = vrot.slane %v477, %v484
      %v487 = vunpack.c.l.s4 1983009808
      %v488 = vunpack.c.0.s8 %v487
      %v489 = vlaneseq
      %v490 = vshrl.u32 %v489, 7
      %v491 = vsub.s32 %v488, %v490
      %v492 = vrot.slane %v478, %v491
      %v493 = vcombine.low %v458, %v466
      %v494 = vcombine.high %v458, %v466
      %v496 = vunpack.c.l.s4 1983009808
      %v497 = vunpack.c.0.s8 %v496
      %v498 = vlaneseq
      %v499 = vshrl.u32 %v498, 7
      %v500 = vsub.s32 %v497, %v499
      %v501 = vrot.slane %v493, %v500
      %v503 = vunpack.c.l.s4 1983009808
      %v504 = vunpack.c.0.s8 %v503
      %v505 = vlaneseq
      %v506 = vshrl.u32 %v505, 7
      %v507 = vsub.s32 %v504, %v506
      %v508 = vrot.slane %v494, %v507
      %v509 = vcombine.low %v485, %v501
      %v510 = vcombine.high %v485, %v501
      %v512 = vunpack.c.l.s4 1934713408
      %v513 = vunpack.c.0.s8 %v512
      %v514 = vlaneseq
      %v515 = vshrl.u32 %v514, 7
      %v516 = vsub.s32 %v513, %v515
      %v517 = vrot.slane %v509, %v516
      %v519 = vunpack.c.l.s4 1934713408
      %v520 = vunpack.c.0.s8 %v519
      %v521 = vlaneseq
      %v522 = vshrl.u32 %v521, 7
      %v523 = vsub.s32 %v520, %v522
      %v524 = vrot.slane %v510, %v523
      %v525 = vcombine.low %v492, %v508
      %v526 = vcombine.high %v492, %v508
      %v528 = vunpack.c.l.s4 1934713408
      %v529 = vunpack.c.0.s8 %v528
      %v530 = vlaneseq
      %v531 = vshrl.u32 %v530, 7
      %v532 = vsub.s32 %v529, %v531
      %v533 = vrot.slane %v525, %v532
      %v535 = vunpack.c.l.s4 1934713408
      %v536 = vunpack.c.0.s8 %v535
      %v537 = vlaneseq
      %v538 = vshrl.u32 %v537, 7
      %v539 = vsub.s32 %v536, %v538
      %v540 = vrot.slane %v526, %v539
      %v541 = vcombine.high %v517, 0.0
      %v542 = vcombine.high %v524, 0.0
      %v543 = vcombine.high %v533, 0.0
      %v544 = vcombine.high %v540, 0.0
      %v545 = vcombine.low %v456, %v464
      %v546 = vcombine.high %v456, %v464
      %v548 = vunpack.c.l.s4 1983009808
      %v549 = vunpack.c.0.s8 %v548
      %v550 = vlaneseq
      %v551 = vshrl.u32 %v550, 7
      %v552 = vsub.s32 %v549, %v551
      %v553 = vrot.slane %v545, %v552
      %v555 = vunpack.c.l.s4 1983009808
      %v556 = vunpack.c.0.s8 %v555
      %v557 = vlaneseq
      %v558 = vshrl.u32 %v557, 7
      %v559 = vsub.s32 %v556, %v558
      %v560 = vrot.slane %v546, %v559
      %v561 = vcombine.low %v460, %v468
      %v562 = vcombine.high %v460, %v468
      %v564 = vunpack.c.l.s4 1983009808
      %v565 = vunpack.c.0.s8 %v564
      %v566 = vlaneseq
      %v567 = vshrl.u32 %v566, 7
      %v568 = vsub.s32 %v565, %v567
      %v569 = vrot.slane %v561, %v568
      %v571 = vunpack.c.l.s4 1983009808
      %v572 = vunpack.c.0.s8 %v571
      %v573 = vlaneseq
      %v574 = vshrl.u32 %v573, 7
      %v575 = vsub.s32 %v572, %v574
      %v576 = vrot.slane %v562, %v575
      %v577 = vcombine.low %v553, %v569
      %v578 = vcombine.high %v553, %v569
      %v580 = vunpack.c.l.s4 1934713408
      %v581 = vunpack.c.0.s8 %v580
      %v582 = vlaneseq
      %v583 = vshrl.u32 %v582, 7
      %v584 = vsub.s32 %v581, %v583
      %v585 = vrot.slane %v577, %v584
      %v587 = vunpack.c.l.s4 1934713408
      %v588 = vunpack.c.0.s8 %v587
      %v589 = vlaneseq
      %v590 = vshrl.u32 %v589, 7
      %v591 = vsub.s32 %v588, %v590
      %v592 = vrot.slane %v578, %v591
      %v593 = vcombine.low %v560, %v576
      %v594 = vcombine.high %v560, %v576
      %v596 = vunpack.c.l.s4 1934713408
      %v597 = vunpack.c.0.s8 %v596
      %v598 = vlaneseq
      %v599 = vshrl.u32 %v598, 7
      %v600 = vsub.s32 %v597, %v599
      %v601 = vrot.slane %v593, %v600
      %v603 = vunpack.c.l.s4 1934713408
      %v604 = vunpack.c.0.s8 %v603
      %v605 = vlaneseq
      %v606 = vshrl.u32 %v605, 7
      %v607 = vsub.s32 %v604, %v606
      %v608 = vrot.slane %v594, %v607
      %v609 = vcombine.high %v585, 0.0
      %v610 = vcombine.high %v592, 0.0
      %v611 = vcombine.high %v601, 0.0
      %v612 = vcombine.high %v608, 0.0
      %614 = vrot.lane.b32.xlu0 %v541, 16
      %v615 = vpop.permute.xlu0 %614
      %618 = vrot.lane.b32.xlu0 %v524, 32
      %v619 = vpop.permute.xlu0 %618
      %622 = vrot.lane.b32.xlu0 %v542, 48
      %v623 = vpop.permute.xlu0 %622
      %626 = vrot.lane.b32.xlu0 %v533, 64
      %v627 = vpop.permute.xlu0 %626
      %630 = vrot.lane.b32.xlu0 %v543, 80
      %v631 = vpop.permute.xlu0 %630
      %634 = vrot.lane.b32.xlu0 %v540, 96
      %v635 = vpop.permute.xlu0 %634
      %638 = vrot.lane.b32.xlu0 %v544, 112
      %v639 = vpop.permute.xlu0 %638
      %642 = vrot.lane.b32.xlu0 %v609, 16
      %v643 = vpop.permute.xlu0 %642
      %646 = vrot.lane.b32.xlu0 %v592, 32
      %v647 = vpop.permute.xlu0 %646
      %650 = vrot.lane.b32.xlu0 %v610, 48
      %v651 = vpop.permute.xlu0 %650
      %654 = vrot.lane.b32.xlu0 %v601, 64
      %v655 = vpop.permute.xlu0 %654
      %658 = vrot.lane.b32.xlu0 %v611, 80
      %v659 = vpop.permute.xlu0 %658
      %662 = vrot.lane.b32.xlu0 %v608, 96
      %v663 = vpop.permute.xlu0 %662
      %666 = vrot.lane.b32.xlu0 %v612, 112
      %v667 = vpop.permute.xlu0 %666
      %v669 = vsel %vm424, %v517, %v615
      %v670 = vsel %vm426, %v669, %v619
      %v671 = vsel %vm428, %v670, %v623
      %v672 = vsel %vm430, %v671, %v627
      %v673 = vsel %vm432, %v672, %v631
      %v674 = vsel %vm434, %v673, %v635
      %v675 = vsel %vm436, %v674, %v639
      %v676 = vsel %vm424, %v585, %v643
      %v677 = vsel %vm426, %v676, %v647
      %v678 = vsel %vm428, %v677, %v651
      %v679 = vsel %vm430, %v678, %v655
      %v680 = vsel %vm432, %v679, %v659
      %v681 = vsel %vm434, %v680, %v663
      %v682 = vsel %vm436, %v681, %v667
      %683 = vrot.lane.b32.xlu0 %v220, 126
      %v684 = vpop.permute.xlu0 %683
      %685 = vrot.lane.b32.xlu0 %v221, 126
      %v686 = vpop.permute.xlu0 %685
      %687 = vrot.lane.b32.xlu0 %v223, 126
      %v688 = vpop.permute.xlu0 %687
      %689 = vrot.lane.b32.xlu0 %v224, 126
      %v690 = vpop.permute.xlu0 %689
      %691 = vrot.lane.b32.xlu0 %v226, 126
      %v692 = vpop.permute.xlu0 %691
      %693 = vrot.lane.b32.xlu0 %v227, 126
      %v694 = vpop.permute.xlu0 %693
      %695 = vrot.lane.b32.xlu0 %v229, 126
      %v696 = vpop.permute.xlu0 %695
      %697 = vrot.lane.b32.xlu0 %v230, 126
      %v698 = vpop.permute.xlu0 %697
      %v707 = vcombine.low %v684, %v692
      %v708 = vcombine.high %v684, %v692
      %v710 = vunpack.c.l.s4 1983009808
      %v711 = vunpack.c.0.s8 %v710
      %v712 = vlaneseq
      %v713 = vshrl.u32 %v712, 7
      %v714 = vsub.s32 %v711, %v713
      %v715 = vrot.slane %v707, %v714
      %v717 = vunpack.c.l.s4 1983009808
      %v718 = vunpack.c.0.s8 %v717
      %v719 = vlaneseq
      %v720 = vshrl.u32 %v719, 7
      %v721 = vsub.s32 %v718, %v720
      %v722 = vrot.slane %v708, %v721
      %v723 = vcombine.low %v688, %v696
      %v724 = vcombine.high %v688, %v696
      %v726 = vunpack.c.l.s4 1983009808
      %v727 = vunpack.c.0.s8 %v726
      %v728 = vlaneseq
      %v729 = vshrl.u32 %v728, 7
      %v730 = vsub.s32 %v727, %v729
      %v731 = vrot.slane %v723, %v730
      %v733 = vunpack.c.l.s4 1983009808
      %v734 = vunpack.c.0.s8 %v733
      %v735 = vlaneseq
      %v736 = vshrl.u32 %v735, 7
      %v737 = vsub.s32 %v734, %v736
      %v738 = vrot.slane %v724, %v737
      %v739 = vcombine.low %v715, %v731
      %v740 = vcombine.high %v715, %v731
      %v742 = vunpack.c.l.s4 1934713408
      %v743 = vunpack.c.0.s8 %v742
      %v744 = vlaneseq
      %v745 = vshrl.u32 %v744, 7
      %v746 = vsub.s32 %v743, %v745
      %v747 = vrot.slane %v739, %v746
      %v749 = vunpack.c.l.s4 1934713408
      %v750 = vunpack.c.0.s8 %v749
      %v751 = vlaneseq
      %v752 = vshrl.u32 %v751, 7
      %v753 = vsub.s32 %v750, %v752
      %v754 = vrot.slane %v740, %v753
      %v755 = vcombine.low %v722, %v738
      %v756 = vcombine.high %v722, %v738
      %v758 = vunpack.c.l.s4 1934713408
      %v759 = vunpack.c.0.s8 %v758
      %v760 = vlaneseq
      %v761 = vshrl.u32 %v760, 7
      %v762 = vsub.s32 %v759, %v761
      %v763 = vrot.slane %v755, %v762
      %v765 = vunpack.c.l.s4 1934713408
      %v766 = vunpack.c.0.s8 %v765
      %v767 = vlaneseq
      %v768 = vshrl.u32 %v767, 7
      %v769 = vsub.s32 %v766, %v768
      %v770 = vrot.slane %v756, %v769
      %v771 = vcombine.high %v747, 0.0
      %v772 = vcombine.high %v754, 0.0
      %v773 = vcombine.high %v763, 0.0
      %v774 = vcombine.high %v770, 0.0
      %v775 = vcombine.low %v686, %v694
      %v776 = vcombine.high %v686, %v694
      %v778 = vunpack.c.l.s4 1983009808
      %v779 = vunpack.c.0.s8 %v778
      %v780 = vlaneseq
      %v781 = vshrl.u32 %v780, 7
      %v782 = vsub.s32 %v779, %v781
      %v783 = vrot.slane %v775, %v782
      %v785 = vunpack.c.l.s4 1983009808
      %v786 = vunpack.c.0.s8 %v785
      %v787 = vlaneseq
      %v788 = vshrl.u32 %v787, 7
      %v789 = vsub.s32 %v786, %v788
      %v790 = vrot.slane %v776, %v789
      %v791 = vcombine.low %v690, %v698
      %v792 = vcombine.high %v690, %v698
      %v794 = vunpack.c.l.s4 1983009808
      %v795 = vunpack.c.0.s8 %v794
      %v796 = vlaneseq
      %v797 = vshrl.u32 %v796, 7
      %v798 = vsub.s32 %v795, %v797
      %v799 = vrot.slane %v791, %v798
      %v801 = vunpack.c.l.s4 1983009808
      %v802 = vunpack.c.0.s8 %v801
      %v803 = vlaneseq
      %v804 = vshrl.u32 %v803, 7
      %v805 = vsub.s32 %v802, %v804
      %v806 = vrot.slane %v792, %v805
      %v807 = vcombine.low %v783, %v799
      %v808 = vcombine.high %v783, %v799
      %v810 = vunpack.c.l.s4 1934713408
      %v811 = vunpack.c.0.s8 %v810
      %v812 = vlaneseq
      %v813 = vshrl.u32 %v812, 7
      %v814 = vsub.s32 %v811, %v813
      %v815 = vrot.slane %v807, %v814
      %v817 = vunpack.c.l.s4 1934713408
      %v818 = vunpack.c.0.s8 %v817
      %v819 = vlaneseq
      %v820 = vshrl.u32 %v819, 7
      %v821 = vsub.s32 %v818, %v820
      %v822 = vrot.slane %v808, %v821
      %v823 = vcombine.low %v790, %v806
      %v824 = vcombine.high %v790, %v806
      %v826 = vunpack.c.l.s4 1934713408
      %v827 = vunpack.c.0.s8 %v826
      %v828 = vlaneseq
      %v829 = vshrl.u32 %v828, 7
      %v830 = vsub.s32 %v827, %v829
      %v831 = vrot.slane %v823, %v830
      %v833 = vunpack.c.l.s4 1934713408
      %v834 = vunpack.c.0.s8 %v833
      %v835 = vlaneseq
      %v836 = vshrl.u32 %v835, 7
      %v837 = vsub.s32 %v834, %v836
      %v838 = vrot.slane %v824, %v837
      %v839 = vcombine.high %v815, 0.0
      %v840 = vcombine.high %v822, 0.0
      %v841 = vcombine.high %v831, 0.0
      %v842 = vcombine.high %v838, 0.0
      %844 = vrot.lane.b32.xlu0 %v771, 16
      %v845 = vpop.permute.xlu0 %844
      %848 = vrot.lane.b32.xlu0 %v754, 32
      %v849 = vpop.permute.xlu0 %848
      %852 = vrot.lane.b32.xlu0 %v772, 48
      %v853 = vpop.permute.xlu0 %852
      %856 = vrot.lane.b32.xlu0 %v763, 64
      %v857 = vpop.permute.xlu0 %856
      %860 = vrot.lane.b32.xlu0 %v773, 80
      %v861 = vpop.permute.xlu0 %860
      %864 = vrot.lane.b32.xlu0 %v770, 96
      %v865 = vpop.permute.xlu0 %864
      %868 = vrot.lane.b32.xlu0 %v774, 112
      %v869 = vpop.permute.xlu0 %868
      %872 = vrot.lane.b32.xlu0 %v839, 16
      %v873 = vpop.permute.xlu0 %872
      %876 = vrot.lane.b32.xlu0 %v822, 32
      %v877 = vpop.permute.xlu0 %876
      %880 = vrot.lane.b32.xlu0 %v840, 48
      %v881 = vpop.permute.xlu0 %880
      %884 = vrot.lane.b32.xlu0 %v831, 64
      %v885 = vpop.permute.xlu0 %884
      %888 = vrot.lane.b32.xlu0 %v841, 80
      %v889 = vpop.permute.xlu0 %888
      %892 = vrot.lane.b32.xlu0 %v838, 96
      %v893 = vpop.permute.xlu0 %892
      %896 = vrot.lane.b32.xlu0 %v842, 112
      %v897 = vpop.permute.xlu0 %896
      %v899 = vsel %vm424, %v747, %v845
      %v900 = vsel %vm426, %v899, %v849
      %v901 = vsel %vm428, %v900, %v853
      %v902 = vsel %vm430, %v901, %v857
      %v903 = vsel %vm432, %v902, %v861
      %v904 = vsel %vm434, %v903, %v865
      %v905 = vsel %vm436, %v904, %v869
      %v906 = vsel %vm424, %v815, %v873
      %v907 = vsel %vm426, %v906, %v877
      %v908 = vsel %vm428, %v907, %v881
      %v909 = vsel %vm430, %v908, %v885
      %v910 = vsel %vm432, %v909, %v889
      %v911 = vsel %vm434, %v910, %v893
      %v912 = vsel %vm436, %v911, %v897
      %vm917 = vcmask 1046528
      %v918 = vrot.slane %v220, 1
      %v919 = vrot.slane %v221, 1
      %v920 = vsel %vm917, %v918, %v919
      %v921 = vrot.slane %v222, 1
      %v922 = vsel %vm917, %v919, %v921
      %v923 = vrot.slane %v223, 1
      %v924 = vrot.slane %v224, 1
      %v925 = vsel %vm917, %v923, %v924
      %v926 = vrot.slane %v225, 1
      %v927 = vsel %vm917, %v924, %v926
      %v928 = vrot.slane %v226, 1
      %v929 = vrot.slane %v227, 1
      %v930 = vsel %vm917, %v928, %v929
      %v931 = vrot.slane %v228, 1
      %v932 = vsel %vm917, %v929, %v931
      %v933 = vrot.slane %v229, 1
      %v934 = vrot.slane %v230, 1
      %v935 = vsel %vm917, %v933, %v934
      %v936 = vrot.slane %v231, 1
      %v937 = vsel %vm917, %v934, %v936
      %v946 = vcombine.low %v920, %v930
      %v947 = vcombine.high %v920, %v930
      %v949 = vunpack.c.l.s4 1983009808
      %v950 = vunpack.c.0.s8 %v949
      %v951 = vlaneseq
      %v952 = vshrl.u32 %v951, 7
      %v953 = vsub.s32 %v950, %v952
      %v954 = vrot.slane %v946, %v953
      %v956 = vunpack.c.l.s4 1983009808
      %v957 = vunpack.c.0.s8 %v956
      %v958 = vlaneseq
      %v959 = vshrl.u32 %v958, 7
      %v960 = vsub.s32 %v957, %v959
      %v961 = vrot.slane %v947, %v960
      %v962 = vcombine.low %v925, %v935
      %v963 = vcombine.high %v925, %v935
      %v965 = vunpack.c.l.s4 1983009808
      %v966 = vunpack.c.0.s8 %v965
      %v967 = vlaneseq
      %v968 = vshrl.u32 %v967, 7
      %v969 = vsub.s32 %v966, %v968
      %v970 = vrot.slane %v962, %v969
      %v972 = vunpack.c.l.s4 1983009808
      %v973 = vunpack.c.0.s8 %v972
      %v974 = vlaneseq
      %v975 = vshrl.u32 %v974, 7
      %v976 = vsub.s32 %v973, %v975
      %v977 = vrot.slane %v963, %v976
      %v978 = vcombine.low %v954, %v970
      %v979 = vcombine.high %v954, %v970
      %v981 = vunpack.c.l.s4 1934713408
      %v982 = vunpack.c.0.s8 %v981
      %v983 = vlaneseq
      %v984 = vshrl.u32 %v983, 7
      %v985 = vsub.s32 %v982, %v984
      %v986 = vrot.slane %v978, %v985
      %v988 = vunpack.c.l.s4 1934713408
      %v989 = vunpack.c.0.s8 %v988
      %v990 = vlaneseq
      %v991 = vshrl.u32 %v990, 7
      %v992 = vsub.s32 %v989, %v991
      %v993 = vrot.slane %v979, %v992
      %v994 = vcombine.low %v961, %v977
      %v995 = vcombine.high %v961, %v977
      %v997 = vunpack.c.l.s4 1934713408
      %v998 = vunpack.c.0.s8 %v997
      %v999 = vlaneseq
      %v1000 = vshrl.u32 %v999, 7
      %v1001 = vsub.s32 %v998, %v1000
      %v1002 = vrot.slane %v994, %v1001
      %v1004 = vunpack.c.l.s4 1934713408
      %v1005 = vunpack.c.0.s8 %v1004
      %v1006 = vlaneseq
      %v1007 = vshrl.u32 %v1006, 7
      %v1008 = vsub.s32 %v1005, %v1007
      %v1009 = vrot.slane %v995, %v1008
      %v1010 = vcombine.high %v986, 0.0
      %v1011 = vcombine.high %v993, 0.0
      %v1012 = vcombine.high %v1002, 0.0
      %v1013 = vcombine.high %v1009, 0.0
      %v1014 = vcombine.low %v922, %v932
      %v1015 = vcombine.high %v922, %v932
      %v1017 = vunpack.c.l.s4 1983009808
      %v1018 = vunpack.c.0.s8 %v1017
      %v1019 = vlaneseq
      %v1020 = vshrl.u32 %v1019, 7
      %v1021 = vsub.s32 %v1018, %v1020
      %v1022 = vrot.slane %v1014, %v1021
      %v1024 = vunpack.c.l.s4 1983009808
      %v1025 = vunpack.c.0.s8 %v1024
      %v1026 = vlaneseq
      %v1027 = vshrl.u32 %v1026, 7
      %v1028 = vsub.s32 %v1025, %v1027
      %v1029 = vrot.slane %v1015, %v1028
      %v1030 = vcombine.low %v927, %v937
      %v1031 = vcombine.high %v927, %v937
      %v1033 = vunpack.c.l.s4 1983009808
      %v1034 = vunpack.c.0.s8 %v1033
      %v1035 = vlaneseq
      %v1036 = vshrl.u32 %v1035, 7
      %v1037 = vsub.s32 %v1034, %v1036
      %v1038 = vrot.slane %v1030, %v1037
      %v1040 = vunpack.c.l.s4 1983009808
      %v1041 = vunpack.c.0.s8 %v1040
      %v1042 = vlaneseq
      %v1043 = vshrl.u32 %v1042, 7
      %v1044 = vsub.s32 %v1041, %v1043
      %v1045 = vrot.slane %v1031, %v1044
      %v1046 = vcombine.low %v1022, %v1038
      %v1047 = vcombine.high %v1022, %v1038
      %v1049 = vunpack.c.l.s4 1934713408
      %v1050 = vunpack.c.0.s8 %v1049
      %v1051 = vlaneseq
      %v1052 = vshrl.u32 %v1051, 7
      %v1053 = vsub.s32 %v1050, %v1052
      %v1054 = vrot.slane %v1046, %v1053
      %v1056 = vunpack.c.l.s4 1934713408
      %v1057 = vunpack.c.0.s8 %v1056
      %v1058 = vlaneseq
      %v1059 = vshrl.u32 %v1058, 7
      %v1060 = vsub.s32 %v1057, %v1059
      %v1061 = vrot.slane %v1047, %v1060
      %v1062 = vcombine.low %v1029, %v1045
      %v1063 = vcombine.high %v1029, %v1045
      %v1065 = vunpack.c.l.s4 1934713408
      %v1066 = vunpack.c.0.s8 %v1065
      %v1067 = vlaneseq
      %v1068 = vshrl.u32 %v1067, 7
      %v1069 = vsub.s32 %v1066, %v1068
      %v1070 = vrot.slane %v1062, %v1069
      %v1072 = vunpack.c.l.s4 1934713408
      %v1073 = vunpack.c.0.s8 %v1072
      %v1074 = vlaneseq
      %v1075 = vshrl.u32 %v1074, 7
      %v1076 = vsub.s32 %v1073, %v1075
      %v1077 = vrot.slane %v1063, %v1076
      %v1078 = vcombine.high %v1054, 0.0
      %v1079 = vcombine.high %v1061, 0.0
      %v1080 = vcombine.high %v1070, 0.0
      %v1081 = vcombine.high %v1077, 0.0
      %1083 = vrot.lane.b32.xlu0 %v1010, 16
      %v1084 = vpop.permute.xlu0 %1083
      %1087 = vrot.lane.b32.xlu0 %v993, 32
      %v1088 = vpop.permute.xlu0 %1087
      %1091 = vrot.lane.b32.xlu0 %v1011, 48
      %v1092 = vpop.permute.xlu0 %1091
      %1095 = vrot.lane.b32.xlu0 %v1002, 64
      %v1096 = vpop.permute.xlu0 %1095
      %1099 = vrot.lane.b32.xlu0 %v1012, 80
      %v1100 = vpop.permute.xlu0 %1099
      %1103 = vrot.lane.b32.xlu0 %v1009, 96
      %v1104 = vpop.permute.xlu0 %1103
      %1107 = vrot.lane.b32.xlu0 %v1013, 112
      %v1108 = vpop.permute.xlu0 %1107
      %1111 = vrot.lane.b32.xlu0 %v1078, 16
      %v1112 = vpop.permute.xlu0 %1111
      %1115 = vrot.lane.b32.xlu0 %v1061, 32
      %v1116 = vpop.permute.xlu0 %1115
      %1119 = vrot.lane.b32.xlu0 %v1079, 48
      %v1120 = vpop.permute.xlu0 %1119
      %1123 = vrot.lane.b32.xlu0 %v1070, 64
      %v1124 = vpop.permute.xlu0 %1123
      %1127 = vrot.lane.b32.xlu0 %v1080, 80
      %v1128 = vpop.permute.xlu0 %1127
      %1131 = vrot.lane.b32.xlu0 %v1077, 96
      %v1132 = vpop.permute.xlu0 %1131
      %1135 = vrot.lane.b32.xlu0 %v1081, 112
      %v1136 = vpop.permute.xlu0 %1135
      %v1138 = vsel %vm424, %v986, %v1084
      %v1139 = vsel %vm426, %v1138, %v1088
      %v1140 = vsel %vm428, %v1139, %v1092
      %v1141 = vsel %vm430, %v1140, %v1096
      %v1142 = vsel %vm432, %v1141, %v1100
      %v1143 = vsel %vm434, %v1142, %v1104
      %v1144 = vsel %vm436, %v1143, %v1108
      %v1145 = vsel %vm424, %v1054, %v1112
      %v1146 = vsel %vm426, %v1145, %v1116
      %v1147 = vsel %vm428, %v1146, %v1120
      %v1148 = vsel %vm430, %v1147, %v1124
      %v1149 = vsel %vm432, %v1148, %v1128
      %v1150 = vsel %vm434, %v1149, %v1132
      %v1151 = vsel %vm436, %v1150, %v1136
      %1152 = vrot.lane.b32.xlu0 %v920, 127
      %v1153 = vpop.permute.xlu0 %1152
      %1154 = vrot.lane.b32.xlu0 %v922, 127
      %v1155 = vpop.permute.xlu0 %1154
      %1156 = vrot.lane.b32.xlu0 %v925, 127
      %v1157 = vpop.permute.xlu0 %1156
      %1158 = vrot.lane.b32.xlu0 %v927, 127
      %v1159 = vpop.permute.xlu0 %1158
      %1160 = vrot.lane.b32.xlu0 %v930, 127
      %v1161 = vpop.permute.xlu0 %1160
      %1162 = vrot.lane.b32.xlu0 %v932, 127
      %v1163 = vpop.permute.xlu0 %1162
      %1164 = vrot.lane.b32.xlu0 %v935, 127
      %v1165 = vpop.permute.xlu0 %1164
      %1166 = vrot.lane.b32.xlu0 %v937, 127
      %v1167 = vpop.permute.xlu0 %1166
      %v1176 = vcombine.low %v1153, %v1161
      %v1177 = vcombine.high %v1153, %v1161
      %v1179 = vunpack.c.l.s4 1983009808
      %v1180 = vunpack.c.0.s8 %v1179
      %v1181 = vlaneseq
      %v1182 = vshrl.u32 %v1181, 7
      %v1183 = vsub.s32 %v1180, %v1182
      %v1184 = vrot.slane %v1176, %v1183
      %v1186 = vunpack.c.l.s4 1983009808
      %v1187 = vunpack.c.0.s8 %v1186
      %v1188 = vlaneseq
      %v1189 = vshrl.u32 %v1188, 7
      %v1190 = vsub.s32 %v1187, %v1189
      %v1191 = vrot.slane %v1177, %v1190
      %v1192 = vcombine.low %v1157, %v1165
      %v1193 = vcombine.high %v1157, %v1165
      %v1195 = vunpack.c.l.s4 1983009808
      %v1196 = vunpack.c.0.s8 %v1195
      %v1197 = vlaneseq
      %v1198 = vshrl.u32 %v1197, 7
      %v1199 = vsub.s32 %v1196, %v1198
      %v1200 = vrot.slane %v1192, %v1199
      %v1202 = vunpack.c.l.s4 1983009808
      %v1203 = vunpack.c.0.s8 %v1202
      %v1204 = vlaneseq
      %v1205 = vshrl.u32 %v1204, 7
      %v1206 = vsub.s32 %v1203, %v1205
      %v1207 = vrot.slane %v1193, %v1206
      %v1208 = vcombine.low %v1184, %v1200
      %v1209 = vcombine.high %v1184, %v1200
      %v1211 = vunpack.c.l.s4 1934713408
      %v1212 = vunpack.c.0.s8 %v1211
      %v1213 = vlaneseq
      %v1214 = vshrl.u32 %v1213, 7
      %v1215 = vsub.s32 %v1212, %v1214
      %v1216 = vrot.slane %v1208, %v1215
      %v1218 = vunpack.c.l.s4 1934713408
      %v1219 = vunpack.c.0.s8 %v1218
      %v1220 = vlaneseq
      %v1221 = vshrl.u32 %v1220, 7
      %v1222 = vsub.s32 %v1219, %v1221
      %v1223 = vrot.slane %v1209, %v1222
      %v1224 = vcombine.low %v1191, %v1207
      %v1225 = vcombine.high %v1191, %v1207
      %v1227 = vunpack.c.l.s4 1934713408
      %v1228 = vunpack.c.0.s8 %v1227
      %v1229 = vlaneseq
      %v1230 = vshrl.u32 %v1229, 7
      %v1231 = vsub.s32 %v1228, %v1230
      %v1232 = vrot.slane %v1224, %v1231
      %v1234 = vunpack.c.l.s4 1934713408
      %v1235 = vunpack.c.0.s8 %v1234
      %v1236 = vlaneseq
      %v1237 = vshrl.u32 %v1236, 7
      %v1238 = vsub.s32 %v1235, %v1237
      %v1239 = vrot.slane %v1225, %v1238
      %v1240 = vcombine.high %v1216, 0.0
      %v1241 = vcombine.high %v1223, 0.0
      %v1242 = vcombine.high %v1232, 0.0
      %v1243 = vcombine.high %v1239, 0.0
      %v1244 = vcombine.low %v1155, %v1163
      %v1245 = vcombine.high %v1155, %v1163
      %v1247 = vunpack.c.l.s4 1983009808
      %v1248 = vunpack.c.0.s8 %v1247
      %v1249 = vlaneseq
      %v1250 = vshrl.u32 %v1249, 7
      %v1251 = vsub.s32 %v1248, %v1250
      %v1252 = vrot.slane %v1244, %v1251
      %v1254 = vunpack.c.l.s4 1983009808
      %v1255 = vunpack.c.0.s8 %v1254
      %v1256 = vlaneseq
      %v1257 = vshrl.u32 %v1256, 7
      %v1258 = vsub.s32 %v1255, %v1257
      %v1259 = vrot.slane %v1245, %v1258
      %v1260 = vcombine.low %v1159, %v1167
      %v1261 = vcombine.high %v1159, %v1167
      %v1263 = vunpack.c.l.s4 1983009808
      %v1264 = vunpack.c.0.s8 %v1263
      %v1265 = vlaneseq
      %v1266 = vshrl.u32 %v1265, 7
      %v1267 = vsub.s32 %v1264, %v1266
      %v1268 = vrot.slane %v1260, %v1267
      %v1270 = vunpack.c.l.s4 1983009808
      %v1271 = vunpack.c.0.s8 %v1270
      %v1272 = vlaneseq
      %v1273 = vshrl.u32 %v1272, 7
      %v1274 = vsub.s32 %v1271, %v1273
      %v1275 = vrot.slane %v1261, %v1274
      %v1276 = vcombine.low %v1252, %v1268
      %v1277 = vcombine.high %v1252, %v1268
      %v1279 = vunpack.c.l.s4 1934713408
      %v1280 = vunpack.c.0.s8 %v1279
      %v1281 = vlaneseq
      %v1282 = vshrl.u32 %v1281, 7
      %v1283 = vsub.s32 %v1280, %v1282
      %v1284 = vrot.slane %v1276, %v1283
      %v1286 = vunpack.c.l.s4 1934713408
      %v1287 = vunpack.c.0.s8 %v1286
      %v1288 = vlaneseq
      %v1289 = vshrl.u32 %v1288, 7
      %v1290 = vsub.s32 %v1287, %v1289
      %v1291 = vrot.slane %v1277, %v1290
      %v1292 = vcombine.low %v1259, %v1275
      %v1293 = vcombine.high %v1259, %v1275
      %v1295 = vunpack.c.l.s4 1934713408
      %v1296 = vunpack.c.0.s8 %v1295
      %v1297 = vlaneseq
      %v1298 = vshrl.u32 %v1297, 7
      %v1299 = vsub.s32 %v1296, %v1298
      %v1300 = vrot.slane %v1292, %v1299
      %v1302 = vunpack.c.l.s4 1934713408
      %v1303 = vunpack.c.0.s8 %v1302
      %v1304 = vlaneseq
      %v1305 = vshrl.u32 %v1304, 7
      %v1306 = vsub.s32 %v1303, %v1305
      %v1307 = vrot.slane %v1293, %v1306
      %v1308 = vcombine.high %v1284, 0.0
      %v1309 = vcombine.high %v1291, 0.0
      %v1310 = vcombine.high %v1300, 0.0
      %v1311 = vcombine.high %v1307, 0.0
      %1313 = vrot.lane.b32.xlu0 %v1240, 16
      %v1314 = vpop.permute.xlu0 %1313
      %1317 = vrot.lane.b32.xlu0 %v1223, 32
      %v1318 = vpop.permute.xlu0 %1317
      %1321 = vrot.lane.b32.xlu0 %v1241, 48
      %v1322 = vpop.permute.xlu0 %1321
      %1325 = vrot.lane.b32.xlu0 %v1232, 64
      %v1326 = vpop.permute.xlu0 %1325
      %1329 = vrot.lane.b32.xlu0 %v1242, 80
      %v1330 = vpop.permute.xlu0 %1329
      %1333 = vrot.lane.b32.xlu0 %v1239, 96
      %v1334 = vpop.permute.xlu0 %1333
      %1337 = vrot.lane.b32.xlu0 %v1243, 112
      %v1338 = vpop.permute.xlu0 %1337
      %1341 = vrot.lane.b32.xlu0 %v1308, 16
      %v1342 = vpop.permute.xlu0 %1341
      %1345 = vrot.lane.b32.xlu0 %v1291, 32
      %v1346 = vpop.permute.xlu0 %1345
      %1349 = vrot.lane.b32.xlu0 %v1309, 48
      %v1350 = vpop.permute.xlu0 %1349
      %1353 = vrot.lane.b32.xlu0 %v1300, 64
      %v1354 = vpop.permute.xlu0 %1353
      %1357 = vrot.lane.b32.xlu0 %v1310, 80
      %v1358 = vpop.permute.xlu0 %1357
      %1361 = vrot.lane.b32.xlu0 %v1307, 96
      %v1362 = vpop.permute.xlu0 %1361
      %1365 = vrot.lane.b32.xlu0 %v1311, 112
      %v1366 = vpop.permute.xlu0 %1365
      %v1368 = vsel %vm424, %v1216, %v1314
      %v1369 = vsel %vm426, %v1368, %v1318
      %v1370 = vsel %vm428, %v1369, %v1322
      %v1371 = vsel %vm430, %v1370, %v1326
      %v1372 = vsel %vm432, %v1371, %v1330
      %v1373 = vsel %vm434, %v1372, %v1334
      %v1374 = vsel %vm436, %v1373, %v1338
      %v1375 = vsel %vm424, %v1284, %v1342
      %v1376 = vsel %vm426, %v1375, %v1346
      %v1377 = vsel %vm428, %v1376, %v1350
      %v1378 = vsel %vm430, %v1377, %v1354
      %v1379 = vsel %vm432, %v1378, %v1358
      %v1380 = vsel %vm434, %v1379, %v1362
      %v1381 = vsel %vm436, %v1380, %v1366
      %1382 = vrot.lane.b32.xlu0 %v920, 126
      %v1383 = vpop.permute.xlu0 %1382
      %1384 = vrot.lane.b32.xlu0 %v922, 126
      %v1385 = vpop.permute.xlu0 %1384
      %1386 = vrot.lane.b32.xlu0 %v925, 126
      %v1387 = vpop.permute.xlu0 %1386
      %1388 = vrot.lane.b32.xlu0 %v927, 126
      %v1389 = vpop.permute.xlu0 %1388
      %1390 = vrot.lane.b32.xlu0 %v930, 126
      %v1391 = vpop.permute.xlu0 %1390
      %1392 = vrot.lane.b32.xlu0 %v932, 126
      %v1393 = vpop.permute.xlu0 %1392
      %1394 = vrot.lane.b32.xlu0 %v935, 126
      %v1395 = vpop.permute.xlu0 %1394
      %1396 = vrot.lane.b32.xlu0 %v937, 126
      %v1397 = vpop.permute.xlu0 %1396
      %v1406 = vcombine.low %v1383, %v1391
      %v1407 = vcombine.high %v1383, %v1391
      %v1409 = vunpack.c.l.s4 1983009808
      %v1410 = vunpack.c.0.s8 %v1409
      %v1411 = vlaneseq
      %v1412 = vshrl.u32 %v1411, 7
      %v1413 = vsub.s32 %v1410, %v1412
      %v1414 = vrot.slane %v1406, %v1413
      %v1416 = vunpack.c.l.s4 1983009808
      %v1417 = vunpack.c.0.s8 %v1416
      %v1418 = vlaneseq
      %v1419 = vshrl.u32 %v1418, 7
      %v1420 = vsub.s32 %v1417, %v1419
      %v1421 = vrot.slane %v1407, %v1420
      %v1422 = vcombine.low %v1387, %v1395
      %v1423 = vcombine.high %v1387, %v1395
      %v1425 = vunpack.c.l.s4 1983009808
      %v1426 = vunpack.c.0.s8 %v1425
      %v1427 = vlaneseq
      %v1428 = vshrl.u32 %v1427, 7
      %v1429 = vsub.s32 %v1426, %v1428
      %v1430 = vrot.slane %v1422, %v1429
      %v1432 = vunpack.c.l.s4 1983009808
      %v1433 = vunpack.c.0.s8 %v1432
      %v1434 = vlaneseq
      %v1435 = vshrl.u32 %v1434, 7
      %v1436 = vsub.s32 %v1433, %v1435
      %v1437 = vrot.slane %v1423, %v1436
      %v1438 = vcombine.low %v1414, %v1430
      %v1439 = vcombine.high %v1414, %v1430
      %v1441 = vunpack.c.l.s4 1934713408
      %v1442 = vunpack.c.0.s8 %v1441
      %v1443 = vlaneseq
      %v1444 = vshrl.u32 %v1443, 7
      %v1445 = vsub.s32 %v1442, %v1444
      %v1446 = vrot.slane %v1438, %v1445
      %v1448 = vunpack.c.l.s4 1934713408
      %v1449 = vunpack.c.0.s8 %v1448
      %v1450 = vlaneseq
      %v1451 = vshrl.u32 %v1450, 7
      %v1452 = vsub.s32 %v1449, %v1451
      %v1453 = vrot.slane %v1439, %v1452
      %v1454 = vcombine.low %v1421, %v1437
      %v1455 = vcombine.high %v1421, %v1437
      %v1457 = vunpack.c.l.s4 1934713408
      %v1458 = vunpack.c.0.s8 %v1457
      %v1459 = vlaneseq
      %v1460 = vshrl.u32 %v1459, 7
      %v1461 = vsub.s32 %v1458, %v1460
      %v1462 = vrot.slane %v1454, %v1461
      %v1464 = vunpack.c.l.s4 1934713408
      %v1465 = vunpack.c.0.s8 %v1464
      %v1466 = vlaneseq
      %v1467 = vshrl.u32 %v1466, 7
      %v1468 = vsub.s32 %v1465, %v1467
      %v1469 = vrot.slane %v1455, %v1468
      %v1470 = vcombine.high %v1446, 0.0
      %v1471 = vcombine.high %v1453, 0.0
      %v1472 = vcombine.high %v1462, 0.0
      %v1473 = vcombine.high %v1469, 0.0
      %v1474 = vcombine.low %v1385, %v1393
      %v1475 = vcombine.high %v1385, %v1393
      %v1477 = vunpack.c.l.s4 1983009808
      %v1478 = vunpack.c.0.s8 %v1477
      %v1479 = vlaneseq
      %v1480 = vshrl.u32 %v1479, 7
      %v1481 = vsub.s32 %v1478, %v1480
      %v1482 = vrot.slane %v1474, %v1481
      %v1484 = vunpack.c.l.s4 1983009808
      %v1485 = vunpack.c.0.s8 %v1484
      %v1486 = vlaneseq
      %v1487 = vshrl.u32 %v1486, 7
      %v1488 = vsub.s32 %v1485, %v1487
      %v1489 = vrot.slane %v1475, %v1488
      %v1490 = vcombine.low %v1389, %v1397
      %v1491 = vcombine.high %v1389, %v1397
      %v1493 = vunpack.c.l.s4 1983009808
      %v1494 = vunpack.c.0.s8 %v1493
      %v1495 = vlaneseq
      %v1496 = vshrl.u32 %v1495, 7
      %v1497 = vsub.s32 %v1494, %v1496
      %v1498 = vrot.slane %v1490, %v1497
      %v1500 = vunpack.c.l.s4 1983009808
      %v1501 = vunpack.c.0.s8 %v1500
      %v1502 = vlaneseq
      %v1503 = vshrl.u32 %v1502, 7
      %v1504 = vsub.s32 %v1501, %v1503
      %v1505 = vrot.slane %v1491, %v1504
      %v1506 = vcombine.low %v1482, %v1498
      %v1507 = vcombine.high %v1482, %v1498
      %v1509 = vunpack.c.l.s4 1934713408
      %v1510 = vunpack.c.0.s8 %v1509
      %v1511 = vlaneseq
      %v1512 = vshrl.u32 %v1511, 7
      %v1513 = vsub.s32 %v1510, %v1512
      %v1514 = vrot.slane %v1506, %v1513
      %v1516 = vunpack.c.l.s4 1934713408
      %v1517 = vunpack.c.0.s8 %v1516
      %v1518 = vlaneseq
      %v1519 = vshrl.u32 %v1518, 7
      %v1520 = vsub.s32 %v1517, %v1519
      %v1521 = vrot.slane %v1507, %v1520
      %v1522 = vcombine.low %v1489, %v1505
      %v1523 = vcombine.high %v1489, %v1505
      %v1525 = vunpack.c.l.s4 1934713408
      %v1526 = vunpack.c.0.s8 %v1525
      %v1527 = vlaneseq
      %v1528 = vshrl.u32 %v1527, 7
      %v1529 = vsub.s32 %v1526, %v1528
      %v1530 = vrot.slane %v1522, %v1529
      %v1532 = vunpack.c.l.s4 1934713408
      %v1533 = vunpack.c.0.s8 %v1532
      %v1534 = vlaneseq
      %v1535 = vshrl.u32 %v1534, 7
      %v1536 = vsub.s32 %v1533, %v1535
      %v1537 = vrot.slane %v1523, %v1536
      %v1538 = vcombine.high %v1514, 0.0
      %v1539 = vcombine.high %v1521, 0.0
      %v1540 = vcombine.high %v1530, 0.0
      %v1541 = vcombine.high %v1537, 0.0
      %1543 = vrot.lane.b32.xlu0 %v1470, 16
      %v1544 = vpop.permute.xlu0 %1543
      %1547 = vrot.lane.b32.xlu0 %v1453, 32
      %v1548 = vpop.permute.xlu0 %1547
      %1551 = vrot.lane.b32.xlu0 %v1471, 48
      %v1552 = vpop.permute.xlu0 %1551
      %1555 = vrot.lane.b32.xlu0 %v1462, 64
      %v1556 = vpop.permute.xlu0 %1555
      %1559 = vrot.lane.b32.xlu0 %v1472, 80
      %v1560 = vpop.permute.xlu0 %1559
      %1563 = vrot.lane.b32.xlu0 %v1469, 96
      %v1564 = vpop.permute.xlu0 %1563
      %1567 = vrot.lane.b32.xlu0 %v1473, 112
      %v1568 = vpop.permute.xlu0 %1567
      %1571 = vrot.lane.b32.xlu0 %v1538, 16
      %v1572 = vpop.permute.xlu0 %1571
      %1575 = vrot.lane.b32.xlu0 %v1521, 32
      %v1576 = vpop.permute.xlu0 %1575
      %1579 = vrot.lane.b32.xlu0 %v1539, 48
      %v1580 = vpop.permute.xlu0 %1579
      %1583 = vrot.lane.b32.xlu0 %v1530, 64
      %v1584 = vpop.permute.xlu0 %1583
      %1587 = vrot.lane.b32.xlu0 %v1540, 80
      %v1588 = vpop.permute.xlu0 %1587
      %1591 = vrot.lane.b32.xlu0 %v1537, 96
      %v1592 = vpop.permute.xlu0 %1591
      %1595 = vrot.lane.b32.xlu0 %v1541, 112
      %v1596 = vpop.permute.xlu0 %1595
      %v1598 = vsel %vm424, %v1446, %v1544
      %v1599 = vsel %vm426, %v1598, %v1548
      %v1600 = vsel %vm428, %v1599, %v1552
      %v1601 = vsel %vm430, %v1600, %v1556
      %v1602 = vsel %vm432, %v1601, %v1560
      %v1603 = vsel %vm434, %v1602, %v1564
      %v1604 = vsel %vm436, %v1603, %v1568
      %v1605 = vsel %vm424, %v1514, %v1572
      %v1606 = vsel %vm426, %v1605, %v1576
      %v1607 = vsel %vm428, %v1606, %v1580
      %v1608 = vsel %vm430, %v1607, %v1584
      %v1609 = vsel %vm432, %v1608, %v1588
      %v1610 = vsel %vm434, %v1609, %v1592
      %v1611 = vsel %vm436, %v1610, %v1596
      %vm1612 = vcmask 1045504
      %v1613 = vrot.slane %v220, 2
      %v1614 = vrot.slane %v221, 2
      %v1615 = vsel %vm1612, %v1613, %v1614
      %v1616 = vrot.slane %v222, 2
      %v1617 = vsel %vm1612, %v1614, %v1616
      %v1618 = vrot.slane %v223, 2
      %v1619 = vrot.slane %v224, 2
      %v1620 = vsel %vm1612, %v1618, %v1619
      %v1621 = vrot.slane %v225, 2
      %v1622 = vsel %vm1612, %v1619, %v1621
      %v1623 = vrot.slane %v226, 2
      %v1624 = vrot.slane %v227, 2
      %v1625 = vsel %vm1612, %v1623, %v1624
      %v1626 = vrot.slane %v228, 2
      %v1627 = vsel %vm1612, %v1624, %v1626
      %v1628 = vrot.slane %v229, 2
      %v1629 = vrot.slane %v230, 2
      %v1630 = vsel %vm1612, %v1628, %v1629
      %v1631 = vrot.slane %v231, 2
      %v1632 = vsel %vm1612, %v1629, %v1631
      %v1641 = vcombine.low %v1615, %v1625
      %v1642 = vcombine.high %v1615, %v1625
      %v1644 = vunpack.c.l.s4 1983009808
      %v1645 = vunpack.c.0.s8 %v1644
      %v1646 = vlaneseq
      %v1647 = vshrl.u32 %v1646, 7
      %v1648 = vsub.s32 %v1645, %v1647
      %v1649 = vrot.slane %v1641, %v1648
      %v1651 = vunpack.c.l.s4 1983009808
      %v1652 = vunpack.c.0.s8 %v1651
      %v1653 = vlaneseq
      %v1654 = vshrl.u32 %v1653, 7
      %v1655 = vsub.s32 %v1652, %v1654
      %v1656 = vrot.slane %v1642, %v1655
      %v1657 = vcombine.low %v1620, %v1630
      %v1658 = vcombine.high %v1620, %v1630
      %v1660 = vunpack.c.l.s4 1983009808
      %v1661 = vunpack.c.0.s8 %v1660
      %v1662 = vlaneseq
      %v1663 = vshrl.u32 %v1662, 7
      %v1664 = vsub.s32 %v1661, %v1663
      %v1665 = vrot.slane %v1657, %v1664
      %v1667 = vunpack.c.l.s4 1983009808
      %v1668 = vunpack.c.0.s8 %v1667
      %v1669 = vlaneseq
      %v1670 = vshrl.u32 %v1669, 7
      %v1671 = vsub.s32 %v1668, %v1670
      %v1672 = vrot.slane %v1658, %v1671
      %v1673 = vcombine.low %v1649, %v1665
      %v1674 = vcombine.high %v1649, %v1665
      %v1676 = vunpack.c.l.s4 1934713408
      %v1677 = vunpack.c.0.s8 %v1676
      %v1678 = vlaneseq
      %v1679 = vshrl.u32 %v1678, 7
      %v1680 = vsub.s32 %v1677, %v1679
      %v1681 = vrot.slane %v1673, %v1680
      %v1683 = vunpack.c.l.s4 1934713408
      %v1684 = vunpack.c.0.s8 %v1683
      %v1685 = vlaneseq
      %v1686 = vshrl.u32 %v1685, 7
      %v1687 = vsub.s32 %v1684, %v1686
      %v1688 = vrot.slane %v1674, %v1687
      %v1689 = vcombine.low %v1656, %v1672
      %v1690 = vcombine.high %v1656, %v1672
      %v1692 = vunpack.c.l.s4 1934713408
      %v1693 = vunpack.c.0.s8 %v1692
      %v1694 = vlaneseq
      %v1695 = vshrl.u32 %v1694, 7
      %v1696 = vsub.s32 %v1693, %v1695
      %v1697 = vrot.slane %v1689, %v1696
      %v1699 = vunpack.c.l.s4 1934713408
      %v1700 = vunpack.c.0.s8 %v1699
      %v1701 = vlaneseq
      %v1702 = vshrl.u32 %v1701, 7
      %v1703 = vsub.s32 %v1700, %v1702
      %v1704 = vrot.slane %v1690, %v1703
      %v1705 = vcombine.high %v1681, 0.0
      %v1706 = vcombine.high %v1688, 0.0
      %v1707 = vcombine.high %v1697, 0.0
      %v1708 = vcombine.high %v1704, 0.0
      %v1709 = vcombine.low %v1617, %v1627
      %v1710 = vcombine.high %v1617, %v1627
      %v1712 = vunpack.c.l.s4 1983009808
      %v1713 = vunpack.c.0.s8 %v1712
      %v1714 = vlaneseq
      %v1715 = vshrl.u32 %v1714, 7
      %v1716 = vsub.s32 %v1713, %v1715
      %v1717 = vrot.slane %v1709, %v1716
      %v1719 = vunpack.c.l.s4 1983009808
      %v1720 = vunpack.c.0.s8 %v1719
      %v1721 = vlaneseq
      %v1722 = vshrl.u32 %v1721, 7
      %v1723 = vsub.s32 %v1720, %v1722
      %v1724 = vrot.slane %v1710, %v1723
      %v1725 = vcombine.low %v1622, %v1632
      %v1726 = vcombine.high %v1622, %v1632
      %v1728 = vunpack.c.l.s4 1983009808
      %v1729 = vunpack.c.0.s8 %v1728
      %v1730 = vlaneseq
      %v1731 = vshrl.u32 %v1730, 7
      %v1732 = vsub.s32 %v1729, %v1731
      %v1733 = vrot.slane %v1725, %v1732
      %v1735 = vunpack.c.l.s4 1983009808
      %v1736 = vunpack.c.0.s8 %v1735
      %v1737 = vlaneseq
      %v1738 = vshrl.u32 %v1737, 7
      %v1739 = vsub.s32 %v1736, %v1738
      %v1740 = vrot.slane %v1726, %v1739
      %v1741 = vcombine.low %v1717, %v1733
      %v1742 = vcombine.high %v1717, %v1733
      %v1744 = vunpack.c.l.s4 1934713408
      %v1745 = vunpack.c.0.s8 %v1744
      %v1746 = vlaneseq
      %v1747 = vshrl.u32 %v1746, 7
      %v1748 = vsub.s32 %v1745, %v1747
      %v1749 = vrot.slane %v1741, %v1748
      %v1751 = vunpack.c.l.s4 1934713408
      %v1752 = vunpack.c.0.s8 %v1751
      %v1753 = vlaneseq
      %v1754 = vshrl.u32 %v1753, 7
      %v1755 = vsub.s32 %v1752, %v1754
      %v1756 = vrot.slane %v1742, %v1755
      %v1757 = vcombine.low %v1724, %v1740
      %v1758 = vcombine.high %v1724, %v1740
      %v1760 = vunpack.c.l.s4 1934713408
      %v1761 = vunpack.c.0.s8 %v1760
      %v1762 = vlaneseq
      %v1763 = vshrl.u32 %v1762, 7
      %v1764 = vsub.s32 %v1761, %v1763
      %v1765 = vrot.slane %v1757, %v1764
      %v1767 = vunpack.c.l.s4 1934713408
      %v1768 = vunpack.c.0.s8 %v1767
      %v1769 = vlaneseq
      %v1770 = vshrl.u32 %v1769, 7
      %v1771 = vsub.s32 %v1768, %v1770
      %v1772 = vrot.slane %v1758, %v1771
      %v1773 = vcombine.high %v1749, 0.0
      %v1774 = vcombine.high %v1756, 0.0
      %v1775 = vcombine.high %v1765, 0.0
      %v1776 = vcombine.high %v1772, 0.0
      %1778 = vrot.lane.b32.xlu0 %v1705, 16
      %v1779 = vpop.permute.xlu0 %1778
      %1782 = vrot.lane.b32.xlu0 %v1688, 32
      %v1783 = vpop.permute.xlu0 %1782
      %1786 = vrot.lane.b32.xlu0 %v1706, 48
      %v1787 = vpop.permute.xlu0 %1786
      %1790 = vrot.lane.b32.xlu0 %v1697, 64
      %v1791 = vpop.permute.xlu0 %1790
      %1794 = vrot.lane.b32.xlu0 %v1707, 80
      %v1795 = vpop.permute.xlu0 %1794
      %1798 = vrot.lane.b32.xlu0 %v1704, 96
      %v1799 = vpop.permute.xlu0 %1798
      %1802 = vrot.lane.b32.xlu0 %v1708, 112
      %v1803 = vpop.permute.xlu0 %1802
      %1806 = vrot.lane.b32.xlu0 %v1773, 16
      %v1807 = vpop.permute.xlu0 %1806
      %1810 = vrot.lane.b32.xlu0 %v1756, 32
      %v1811 = vpop.permute.xlu0 %1810
      %1814 = vrot.lane.b32.xlu0 %v1774, 48
      %v1815 = vpop.permute.xlu0 %1814
      %1818 = vrot.lane.b32.xlu0 %v1765, 64
      %v1819 = vpop.permute.xlu0 %1818
      %1822 = vrot.lane.b32.xlu0 %v1775, 80
      %v1823 = vpop.permute.xlu0 %1822
      %1826 = vrot.lane.b32.xlu0 %v1772, 96
      %v1827 = vpop.permute.xlu0 %1826
      %1830 = vrot.lane.b32.xlu0 %v1776, 112
      %v1831 = vpop.permute.xlu0 %1830
      %v1833 = vsel %vm424, %v1681, %v1779
      %v1834 = vsel %vm426, %v1833, %v1783
      %v1835 = vsel %vm428, %v1834, %v1787
      %v1836 = vsel %vm430, %v1835, %v1791
      %v1837 = vsel %vm432, %v1836, %v1795
      %v1838 = vsel %vm434, %v1837, %v1799
      %v1839 = vsel %vm436, %v1838, %v1803
      %v1840 = vsel %vm424, %v1749, %v1807
      %v1841 = vsel %vm426, %v1840, %v1811
      %v1842 = vsel %vm428, %v1841, %v1815
      %v1843 = vsel %vm430, %v1842, %v1819
      %v1844 = vsel %vm432, %v1843, %v1823
      %v1845 = vsel %vm434, %v1844, %v1827
      %v1846 = vsel %vm436, %v1845, %v1831
      %1847 = vrot.lane.b32.xlu0 %v1615, 127
      %v1848 = vpop.permute.xlu0 %1847
      %1849 = vrot.lane.b32.xlu0 %v1617, 127
      %v1850 = vpop.permute.xlu0 %1849
      %1851 = vrot.lane.b32.xlu0 %v1620, 127
      %v1852 = vpop.permute.xlu0 %1851
      %1853 = vrot.lane.b32.xlu0 %v1622, 127
      %v1854 = vpop.permute.xlu0 %1853
      %1855 = vrot.lane.b32.xlu0 %v1625, 127
      %v1856 = vpop.permute.xlu0 %1855
      %1857 = vrot.lane.b32.xlu0 %v1627, 127
      %v1858 = vpop.permute.xlu0 %1857
      %1859 = vrot.lane.b32.xlu0 %v1630, 127
      %v1860 = vpop.permute.xlu0 %1859
      %1861 = vrot.lane.b32.xlu0 %v1632, 127
      %v1862 = vpop.permute.xlu0 %1861
      %v1871 = vcombine.low %v1848, %v1856
      %v1872 = vcombine.high %v1848, %v1856
      %v1874 = vunpack.c.l.s4 1983009808
      %v1875 = vunpack.c.0.s8 %v1874
      %v1876 = vlaneseq
      %v1877 = vshrl.u32 %v1876, 7
      %v1878 = vsub.s32 %v1875, %v1877
      %v1879 = vrot.slane %v1871, %v1878
      %v1881 = vunpack.c.l.s4 1983009808
      %v1882 = vunpack.c.0.s8 %v1881
      %v1883 = vlaneseq
      %v1884 = vshrl.u32 %v1883, 7
      %v1885 = vsub.s32 %v1882, %v1884
      %v1886 = vrot.slane %v1872, %v1885
      %v1887 = vcombine.low %v1852, %v1860
      %v1888 = vcombine.high %v1852, %v1860
      %v1890 = vunpack.c.l.s4 1983009808
      %v1891 = vunpack.c.0.s8 %v1890
      %v1892 = vlaneseq
      %v1893 = vshrl.u32 %v1892, 7
      %v1894 = vsub.s32 %v1891, %v1893
      %v1895 = vrot.slane %v1887, %v1894
      %v1897 = vunpack.c.l.s4 1983009808
      %v1898 = vunpack.c.0.s8 %v1897
      %v1899 = vlaneseq
      %v1900 = vshrl.u32 %v1899, 7
      %v1901 = vsub.s32 %v1898, %v1900
      %v1902 = vrot.slane %v1888, %v1901
      %v1903 = vcombine.low %v1879, %v1895
      %v1904 = vcombine.high %v1879, %v1895
      %v1906 = vunpack.c.l.s4 1934713408
      %v1907 = vunpack.c.0.s8 %v1906
      %v1908 = vlaneseq
      %v1909 = vshrl.u32 %v1908, 7
      %v1910 = vsub.s32 %v1907, %v1909
      %v1911 = vrot.slane %v1903, %v1910
      %v1913 = vunpack.c.l.s4 1934713408
      %v1914 = vunpack.c.0.s8 %v1913
      %v1915 = vlaneseq
      %v1916 = vshrl.u32 %v1915, 7
      %v1917 = vsub.s32 %v1914, %v1916
      %v1918 = vrot.slane %v1904, %v1917
      %v1919 = vcombine.low %v1886, %v1902
      %v1920 = vcombine.high %v1886, %v1902
      %v1922 = vunpack.c.l.s4 1934713408
      %v1923 = vunpack.c.0.s8 %v1922
      %v1924 = vlaneseq
      %v1925 = vshrl.u32 %v1924, 7
      %v1926 = vsub.s32 %v1923, %v1925
      %v1927 = vrot.slane %v1919, %v1926
      %v1929 = vunpack.c.l.s4 1934713408
      %v1930 = vunpack.c.0.s8 %v1929
      %v1931 = vlaneseq
      %v1932 = vshrl.u32 %v1931, 7
      %v1933 = vsub.s32 %v1930, %v1932
      %v1934 = vrot.slane %v1920, %v1933
      %v1935 = vcombine.high %v1911, 0.0
      %v1936 = vcombine.high %v1918, 0.0
      %v1937 = vcombine.high %v1927, 0.0
      %v1938 = vcombine.high %v1934, 0.0
      %v1939 = vcombine.low %v1850, %v1858
      %v1940 = vcombine.high %v1850, %v1858
      %v1942 = vunpack.c.l.s4 1983009808
      %v1943 = vunpack.c.0.s8 %v1942
      %v1944 = vlaneseq
      %v1945 = vshrl.u32 %v1944, 7
      %v1946 = vsub.s32 %v1943, %v1945
      %v1947 = vrot.slane %v1939, %v1946
      %v1949 = vunpack.c.l.s4 1983009808
      %v1950 = vunpack.c.0.s8 %v1949
      %v1951 = vlaneseq
      %v1952 = vshrl.u32 %v1951, 7
      %v1953 = vsub.s32 %v1950, %v1952
      %v1954 = vrot.slane %v1940, %v1953
      %v1955 = vcombine.low %v1854, %v1862
      %v1956 = vcombine.high %v1854, %v1862
      %v1958 = vunpack.c.l.s4 1983009808
      %v1959 = vunpack.c.0.s8 %v1958
      %v1960 = vlaneseq
      %v1961 = vshrl.u32 %v1960, 7
      %v1962 = vsub.s32 %v1959, %v1961
      %v1963 = vrot.slane %v1955, %v1962
      %v1965 = vunpack.c.l.s4 1983009808
      %v1966 = vunpack.c.0.s8 %v1965
      %v1967 = vlaneseq
      %v1968 = vshrl.u32 %v1967, 7
      %v1969 = vsub.s32 %v1966, %v1968
      %v1970 = vrot.slane %v1956, %v1969
      %v1971 = vcombine.low %v1947, %v1963
      %v1972 = vcombine.high %v1947, %v1963
      %v1974 = vunpack.c.l.s4 1934713408
      %v1975 = vunpack.c.0.s8 %v1974
      %v1976 = vlaneseq
      %v1977 = vshrl.u32 %v1976, 7
      %v1978 = vsub.s32 %v1975, %v1977
      %v1979 = vrot.slane %v1971, %v1978
      %v1981 = vunpack.c.l.s4 1934713408
      %v1982 = vunpack.c.0.s8 %v1981
      %v1983 = vlaneseq
      %v1984 = vshrl.u32 %v1983, 7
      %v1985 = vsub.s32 %v1982, %v1984
      %v1986 = vrot.slane %v1972, %v1985
      %v1987 = vcombine.low %v1954, %v1970
      %v1988 = vcombine.high %v1954, %v1970
      %v1990 = vunpack.c.l.s4 1934713408
      %v1991 = vunpack.c.0.s8 %v1990
      %v1992 = vlaneseq
      %v1993 = vshrl.u32 %v1992, 7
      %v1994 = vsub.s32 %v1991, %v1993
      %v1995 = vrot.slane %v1987, %v1994
      %v1997 = vunpack.c.l.s4 1934713408
      %v1998 = vunpack.c.0.s8 %v1997
      %v1999 = vlaneseq
      %v2000 = vshrl.u32 %v1999, 7
      %v2001 = vsub.s32 %v1998, %v2000
      %v2002 = vrot.slane %v1988, %v2001
      %v2003 = vcombine.high %v1979, 0.0
      %v2004 = vcombine.high %v1986, 0.0
      %v2005 = vcombine.high %v1995, 0.0
      %v2006 = vcombine.high %v2002, 0.0
      %2008 = vrot.lane.b32.xlu0 %v1935, 16
      %v2009 = vpop.permute.xlu0 %2008
      %2012 = vrot.lane.b32.xlu0 %v1918, 32
      %v2013 = vpop.permute.xlu0 %2012
      %2016 = vrot.lane.b32.xlu0 %v1936, 48
      %v2017 = vpop.permute.xlu0 %2016
      %2020 = vrot.lane.b32.xlu0 %v1927, 64
      %v2021 = vpop.permute.xlu0 %2020
      %2024 = vrot.lane.b32.xlu0 %v1937, 80
      %v2025 = vpop.permute.xlu0 %2024
      %2028 = vrot.lane.b32.xlu0 %v1934, 96
      %v2029 = vpop.permute.xlu0 %2028
      %2032 = vrot.lane.b32.xlu0 %v1938, 112
      %v2033 = vpop.permute.xlu0 %2032
      %2036 = vrot.lane.b32.xlu0 %v2003, 16
      %v2037 = vpop.permute.xlu0 %2036
      %2040 = vrot.lane.b32.xlu0 %v1986, 32
      %v2041 = vpop.permute.xlu0 %2040
      %2044 = vrot.lane.b32.xlu0 %v2004, 48
      %v2045 = vpop.permute.xlu0 %2044
      %2048 = vrot.lane.b32.xlu0 %v1995, 64
      %v2049 = vpop.permute.xlu0 %2048
      %2052 = vrot.lane.b32.xlu0 %v2005, 80
      %v2053 = vpop.permute.xlu0 %2052
      %2056 = vrot.lane.b32.xlu0 %v2002, 96
      %v2057 = vpop.permute.xlu0 %2056
      %2060 = vrot.lane.b32.xlu0 %v2006, 112
      %v2061 = vpop.permute.xlu0 %2060
      %v2063 = vsel %vm424, %v1911, %v2009
      %v2064 = vsel %vm426, %v2063, %v2013
      %v2065 = vsel %vm428, %v2064, %v2017
      %v2066 = vsel %vm430, %v2065, %v2021
      %v2067 = vsel %vm432, %v2066, %v2025
      %v2068 = vsel %vm434, %v2067, %v2029
      %v2069 = vsel %vm436, %v2068, %v2033
      %v2070 = vsel %vm424, %v1979, %v2037
      %v2071 = vsel %vm426, %v2070, %v2041
      %v2072 = vsel %vm428, %v2071, %v2045
      %v2073 = vsel %vm430, %v2072, %v2049
      %v2074 = vsel %vm432, %v2073, %v2053
      %v2075 = vsel %vm434, %v2074, %v2057
      %v2076 = vsel %vm436, %v2075, %v2061
      %2077 = vrot.lane.b32.xlu0 %v1615, 126
      %v2078 = vpop.permute.xlu0 %2077
      %2079 = vrot.lane.b32.xlu0 %v1617, 126
      %v2080 = vpop.permute.xlu0 %2079
      %2081 = vrot.lane.b32.xlu0 %v1620, 126
      %v2082 = vpop.permute.xlu0 %2081
      %2083 = vrot.lane.b32.xlu0 %v1622, 126
      %v2084 = vpop.permute.xlu0 %2083
      %2085 = vrot.lane.b32.xlu0 %v1625, 126
      %v2086 = vpop.permute.xlu0 %2085
      %2087 = vrot.lane.b32.xlu0 %v1627, 126
      %v2088 = vpop.permute.xlu0 %2087
      %2089 = vrot.lane.b32.xlu0 %v1630, 126
      %v2090 = vpop.permute.xlu0 %2089
      %2091 = vrot.lane.b32.xlu0 %v1632, 126
      %v2092 = vpop.permute.xlu0 %2091
      %v2101 = vcombine.low %v2078, %v2086
      %v2102 = vcombine.high %v2078, %v2086
      %v2104 = vunpack.c.l.s4 1983009808
      %v2105 = vunpack.c.0.s8 %v2104
      %v2106 = vlaneseq
      %v2107 = vshrl.u32 %v2106, 7
      %v2108 = vsub.s32 %v2105, %v2107
      %v2109 = vrot.slane %v2101, %v2108
      %v2111 = vunpack.c.l.s4 1983009808
      %v2112 = vunpack.c.0.s8 %v2111
      %v2113 = vlaneseq
      %v2114 = vshrl.u32 %v2113, 7
      %v2115 = vsub.s32 %v2112, %v2114
      %v2116 = vrot.slane %v2102, %v2115
      %v2117 = vcombine.low %v2082, %v2090
      %v2118 = vcombine.high %v2082, %v2090
      %v2120 = vunpack.c.l.s4 1983009808
      %v2121 = vunpack.c.0.s8 %v2120
      %v2122 = vlaneseq
      %v2123 = vshrl.u32 %v2122, 7
      %v2124 = vsub.s32 %v2121, %v2123
      %v2125 = vrot.slane %v2117, %v2124
      %v2127 = vunpack.c.l.s4 1983009808
      %v2128 = vunpack.c.0.s8 %v2127
      %v2129 = vlaneseq
      %v2130 = vshrl.u32 %v2129, 7
      %v2131 = vsub.s32 %v2128, %v2130
      %v2132 = vrot.slane %v2118, %v2131
      %v2133 = vcombine.low %v2109, %v2125
      %v2134 = vcombine.high %v2109, %v2125
      %v2136 = vunpack.c.l.s4 1934713408
      %v2137 = vunpack.c.0.s8 %v2136
      %v2138 = vlaneseq
      %v2139 = vshrl.u32 %v2138, 7
      %v2140 = vsub.s32 %v2137, %v2139
      %v2141 = vrot.slane %v2133, %v2140
      %v2143 = vunpack.c.l.s4 1934713408
      %v2144 = vunpack.c.0.s8 %v2143
      %v2145 = vlaneseq
      %v2146 = vshrl.u32 %v2145, 7
      %v2147 = vsub.s32 %v2144, %v2146
      %v2148 = vrot.slane %v2134, %v2147
      %v2149 = vcombine.low %v2116, %v2132
      %v2150 = vcombine.high %v2116, %v2132
      %v2152 = vunpack.c.l.s4 1934713408
      %v2153 = vunpack.c.0.s8 %v2152
      %v2154 = vlaneseq
      %v2155 = vshrl.u32 %v2154, 7
      %v2156 = vsub.s32 %v2153, %v2155
      %v2157 = vrot.slane %v2149, %v2156
      %v2159 = vunpack.c.l.s4 1934713408
      %v2160 = vunpack.c.0.s8 %v2159
      %v2161 = vlaneseq
      %v2162 = vshrl.u32 %v2161, 7
      %v2163 = vsub.s32 %v2160, %v2162
      %v2164 = vrot.slane %v2150, %v2163
      %v2165 = vcombine.high %v2141, 0.0
      %v2166 = vcombine.high %v2148, 0.0
      %v2167 = vcombine.high %v2157, 0.0
      %v2168 = vcombine.high %v2164, 0.0
      %v2169 = vcombine.low %v2080, %v2088
      %v2170 = vcombine.high %v2080, %v2088
      %v2172 = vunpack.c.l.s4 1983009808
      %v2173 = vunpack.c.0.s8 %v2172
      %v2174 = vlaneseq
      %v2175 = vshrl.u32 %v2174, 7
      %v2176 = vsub.s32 %v2173, %v2175
      %v2177 = vrot.slane %v2169, %v2176
      %v2179 = vunpack.c.l.s4 1983009808
      %v2180 = vunpack.c.0.s8 %v2179
      %v2181 = vlaneseq
      %v2182 = vshrl.u32 %v2181, 7
      %v2183 = vsub.s32 %v2180, %v2182
      %v2184 = vrot.slane %v2170, %v2183
      %v2185 = vcombine.low %v2084, %v2092
      %v2186 = vcombine.high %v2084, %v2092
      %v2188 = vunpack.c.l.s4 1983009808
      %v2189 = vunpack.c.0.s8 %v2188
      %v2190 = vlaneseq
      %v2191 = vshrl.u32 %v2190, 7
      %v2192 = vsub.s32 %v2189, %v2191
      %v2193 = vrot.slane %v2185, %v2192
      %v2195 = vunpack.c.l.s4 1983009808
      %v2196 = vunpack.c.0.s8 %v2195
      %v2197 = vlaneseq
      %v2198 = vshrl.u32 %v2197, 7
      %v2199 = vsub.s32 %v2196, %v2198
      %v2200 = vrot.slane %v2186, %v2199
      %v2201 = vcombine.low %v2177, %v2193
      %v2202 = vcombine.high %v2177, %v2193
      %v2204 = vunpack.c.l.s4 1934713408
      %v2205 = vunpack.c.0.s8 %v2204
      %v2206 = vlaneseq
      %v2207 = vshrl.u32 %v2206, 7
      %v2208 = vsub.s32 %v2205, %v2207
      %v2209 = vrot.slane %v2201, %v2208
      %v2211 = vunpack.c.l.s4 1934713408
      %v2212 = vunpack.c.0.s8 %v2211
      %v2213 = vlaneseq
      %v2214 = vshrl.u32 %v2213, 7
      %v2215 = vsub.s32 %v2212, %v2214
      %v2216 = vrot.slane %v2202, %v2215
      %v2217 = vcombine.low %v2184, %v2200
      %v2218 = vcombine.high %v2184, %v2200
      %v2220 = vunpack.c.l.s4 1934713408
      %v2221 = vunpack.c.0.s8 %v2220
      %v2222 = vlaneseq
      %v2223 = vshrl.u32 %v2222, 7
      %v2224 = vsub.s32 %v2221, %v2223
      %v2225 = vrot.slane %v2217, %v2224
      %v2227 = vunpack.c.l.s4 1934713408
      %v2228 = vunpack.c.0.s8 %v2227
      %v2229 = vlaneseq
      %v2230 = vshrl.u32 %v2229, 7
      %v2231 = vsub.s32 %v2228, %v2230
      %v2232 = vrot.slane %v2218, %v2231
      %v2233 = vcombine.high %v2209, 0.0
      %v2234 = vcombine.high %v2216, 0.0
      %v2235 = vcombine.high %v2225, 0.0
      %v2236 = vcombine.high %v2232, 0.0
      %2238 = vrot.lane.b32.xlu0 %v2165, 16
      %v2239 = vpop.permute.xlu0 %2238
      %2242 = vrot.lane.b32.xlu0 %v2148, 32
      %v2243 = vpop.permute.xlu0 %2242
      %2246 = vrot.lane.b32.xlu0 %v2166, 48
      %v2247 = vpop.permute.xlu0 %2246
      %2250 = vrot.lane.b32.xlu0 %v2157, 64
      %v2251 = vpop.permute.xlu0 %2250
      %2254 = vrot.lane.b32.xlu0 %v2167, 80
      %v2255 = vpop.permute.xlu0 %2254
      %2258 = vrot.lane.b32.xlu0 %v2164, 96
      %v2259 = vpop.permute.xlu0 %2258
      %2262 = vrot.lane.b32.xlu0 %v2168, 112
      %v2263 = vpop.permute.xlu0 %2262
      %2266 = vrot.lane.b32.xlu0 %v2233, 16
      %v2267 = vpop.permute.xlu0 %2266
      %2270 = vrot.lane.b32.xlu0 %v2216, 32
      %v2271 = vpop.permute.xlu0 %2270
      %2274 = vrot.lane.b32.xlu0 %v2234, 48
      %v2275 = vpop.permute.xlu0 %2274
      %2278 = vrot.lane.b32.xlu0 %v2225, 64
      %v2279 = vpop.permute.xlu0 %2278
      %2282 = vrot.lane.b32.xlu0 %v2235, 80
      %v2283 = vpop.permute.xlu0 %2282
      %2286 = vrot.lane.b32.xlu0 %v2232, 96
      %v2287 = vpop.permute.xlu0 %2286
      %2290 = vrot.lane.b32.xlu0 %v2236, 112
      %v2291 = vpop.permute.xlu0 %2290
      %v2293 = vsel %vm424, %v2141, %v2239
      %v2294 = vsel %vm426, %v2293, %v2243
      %v2295 = vsel %vm428, %v2294, %v2247
      %v2296 = vsel %vm430, %v2295, %v2251
      %v2297 = vsel %vm432, %v2296, %v2255
      %v2298 = vsel %vm434, %v2297, %v2259
      %v2299 = vsel %vm436, %v2298, %v2263
      %v2300 = vsel %vm424, %v2209, %v2267
      %v2301 = vsel %vm426, %v2300, %v2271
      %v2302 = vsel %vm428, %v2301, %v2275
      %v2303 = vsel %vm430, %v2302, %v2279
      %v2304 = vsel %vm432, %v2303, %v2283
      %v2305 = vsel %vm434, %v2304, %v2287
      %v2306 = vsel %vm436, %v2305, %v2291
      %v2309 = vrot.slane %v675, 4
      %v2310 = vrot.slane %v682, 4
      %v2315 = vrot.slane %v1144, 4
      %v2316 = vrot.slane %v1151, 4
      %v2321 = vrot.slane %v1604, 4
      %v2322 = vrot.slane %v1611, 4
      %v2327 = vrot.slane %v2069, 4
      %v2328 = vrot.slane %v2076, 4
      %vm2331 = vcmask 1043456
      %v2332 = vsel %vm2331, %v437, %v2309
      %v2333 = vsel %vm2331, %v444, %v2310
      %v2334 = vsel %vm2331, %v905, %v2315
      %v2335 = vsel %vm2331, %v912, %v2316
      %v2336 = vsel %vm2331, %v1374, %v2321
      %v2337 = vsel %vm2331, %v1381, %v2322
      %v2338 = vsel %vm2331, %v1839, %v2327
      %v2339 = vsel %vm2331, %v1846, %v2328
      %v2340 = vpack.c.bf16 %v2334, %v2332
      %v2341 = vpack.c.bf16 %v2335, %v2333
      %v2342 = vpack.c.bf16 %v2338, %v2336
      %v2343 = vpack.c.bf16 %v2339, %v2337
      %v2344 = vpack.c.bf16 %v2299, %v2299
      %v2345 = vpack.c.bf16 %v2306, %v2306
      %v2346 = vld [vmem:[%s1] sm:$0xf]
      %vm2347 = vcmask 293888
      %v2349 = vsel %vm2347, %v2346, 0
      %vm2351 = vcmask 1041408
      %v2353 = vsel %vm2351, %v2344, 0
      %v2356 = vsel %vm2351, %v2345, 0
      %2358 = vmatprep.subr.bf16.mxu0 %v2341
      %2359 = vmatpush1.bf16.msra.mxu0 %v2340
      %2360 = vmatprep.subr.bf16.mxu0 %v2343
      %2361 = vmatpush1.bf16.msra.mxu0 %v2342
      %2362 = vmatprep.subr.bf16.mxu0 %v2356
      %2363 = vmatpush1.bf16.msra.mxu0 %v2353
      %2364 = vmatprep.subr.bf16.mxu0 0
      %2365 = vmatpush1.bf16.msra.mxu0 0
      %2366 = vmatprep.subr.bf16.mxu0 0
      %2367 = vmatpush1.bf16.msra.mxu0 0
      %2368 = vmatprep.subr.bf16.mxu0 0
      %2369 = vmatpush1.bf16.msra.mxu0 0
      %2370 = vmatprep.subr.bf16.mxu0 0
      %2371 = vmatpush1.bf16.msra.mxu0 0
      %2372 = vmatprep.subr.bf16.mxu0 0
      %2373 = vmatpush1.bf16.msra.mxu0 0
      %2374 = vmatprep.subr.bf16.mxu0 0
      %2375 = vmatpush1.bf16.msra.mxu0 0
      %2376 = vmatprep.subr.bf16.mxu0 0
      %2377 = vmatpush1.bf16.msra.mxu0 0
      %2378 = vmatprep.subr.bf16.mxu0 0
      %2379 = vmatpush1.bf16.msra.mxu0 0
      %2380 = vmatprep.subr.bf16.mxu0 0
      %2381 = vmatpush1.bf16.msra.mxu0 0
      %2382 = vmatprep.subr.bf16.mxu0 0
      %2383 = vmatpush1.bf16.msra.mxu0 0
      %2384 = vmatprep.subr.bf16.mxu0 0
      %2385 = vmatpush1.bf16.msra.mxu0 0
      %2386 = vmatprep.subr.bf16.mxu0 0
      %2387 = vmatpush1.bf16.msra.mxu0 0
      %2388 = vmatprep.subr.bf16.mxu0 0
      %2389 = vmatpush1.bf16.msra.mxu0 0
      %2390 = vmatprep.mubr.bf16.mxu0 0
      %2391 = vmatmul.mubr.bf16.gmra.mrb[0].mxu0 %v2349
      %v2392 = vpop.f32.mrb[0].mxu0
      %v2393 = vadd.f32 0.0, %v2392
      %v2394 = vpop.f32.mrb[0].mxu0
      %v2395 = vadd.f32 0.0, %v2394
      %v2396 = vpop.f32.mrb[0].mxu0
      %v2397 = vpop.f32.mrb[0].mxu0
      %2398 = vdwg.mxu0
      %2399 = vst [vmem:[%s210] sm:$0xff] %v2393
      %2400 = vst [vmem:[%s210 + $0x8] sm:$0xff] %v2395
      %v2401 = vadd.f32 %v2393, %v2395
      %2402 = vadd.xlane.f32.xlu0 %v2401
      %v2403 = vpop.xlane.xlu0 %2402
      %v2404 = vrcp.pop 256.0
      %v2405 = vmul.f32 %v2403, %v2404
      %vm2406 = vcmask 7168
      %2407 = vst.msk [vmem:[%s214] sm:$0xff] %vm2406, %v2405
      %v2408 = vsub.f32 %v2393, %v2405
      %v2409 = vsub.f32 %v2395, %v2405
      %v2410 = vmul.f32 %v2408, %v2408
      %v2411 = vmul.f32 %v2409, %v2409
      %v2412 = vadd.f32 %v2410, %v2411
      %2413 = vadd.xlane.f32.xlu0 %v2412
      %v2414 = vpop.xlane.xlu0 %2413
      %2415 = vst.msk [vmem:[%s218] sm:$0xff] %vm2406, %v2414
      %p2416 = scmp.lt.s32.totalorder %s16, 1
      %s2417 = scalar_select %p2416, %s16, 1
      %s2418 = smul.addr %s2417, 2
      %s2419 = smul.addr %s2418, 8
      %s2420 = scalar_lea.vmem %s2, %s2419
      %p2421 = scmp.lt.s32.totalorder %s16, 1
      %s2422 = scalar_select %p2421, %s16, 1
      %s2423 = smul.addr %s2422, 8
      %s2424 = scalar_lea.vmem %s3, %s2423
      %p2425 = scmp.lt.s32.totalorder %s16, 1
      %s2426 = scalar_select %p2425, %s16, 1
      %s2427 = smul.addr %s2426, 8
      %s2428 = scalar_lea.vmem %s4, %s2427
      // Predicated region
      $region29: #{conv_block_forward.2} parent=27 // pred_check
        %p2429 = pneg %p81
      $region30: #{conv_block_forward.2} parent=27 // pred_check_branch
        %2431 = sbr.rel (%p2429) target = $region32
      $region31: #{conv_block_forward.2} parent=27 // pred_region
        _
      $region32: #{conv_block_forward.2} parent=27 // pred_fallthru
        _
      // Predicated region
      $region33: #{conv_block_forward.2} parent=27 // pred_check
        %p2432 = pneg %p107
      $region34: #{conv_block_forward.2} parent=27 // pred_check_branch
        %2434 = sbr.rel (%p2432) target = $region36
      $region35: #{conv_block_forward.2} parent=27 // pred_region
        _
      $region36: #{conv_block_forward.2} parent=27 // pred_fallthru
        _
      // Predicated region
      $region37: #{conv_block_forward.2} parent=27 // pred_check
        %p2435 = pneg %p133
      $region38: #{conv_block_forward.2} parent=27 // pred_check_branch
        %2437 = sbr.rel (%p2435) target = $region40
      $region39: #{conv_block_forward.2} parent=27 // pred_region
        _
      $region40: #{conv_block_forward.2} parent=27 // pred_fallthru
        _
    $region28: #{conv_block_forward.2} parent=5 // pred_fallthru
      _
    %p2438 = scmp.le.s32.totalorder 2, %s11
    // Predicated region
    $region41: #{conv_block_forward.2} parent=5 // pred_check
      %p2439 = pneg %p2438
    $region42: #{conv_block_forward.2} parent=5 // pred_check_branch
      %2441 = sbr.rel (%p2439) target = $region44
    $region43: #{conv_block_forward.2} parent=5 // pred_region
      %s2442 = ssub.s32 %s11, 2
      // Predicated region
      $region45: #{conv_block_forward.2} parent=43 // pred_check
        %p2443 = pneg %p87
      $region46: #{conv_block_forward.2} parent=43 // pred_check_branch
        %2445 = sbr.rel (%p2443) target = $region48
      $region47: #{conv_block_forward.2} parent=43 // pred_region
        %p2446 = scmp.lt.s32.totalorder %s17, 1
        %s2447 = scalar_select %p2446, %s17, 1
        %s2448 = smul.addr %s2447, 2
        %s2449 = smul.addr %s2448, 8
        %s2450 = scalar_lea.vmem %s2, %s2449
      $region48: #{conv_block_forward.2} parent=43 // pred_fallthru
        _
      // Predicated region
      $region49: #{conv_block_forward.2} parent=43 // pred_check
        %p2451 = pneg %p113
      $region50: #{conv_block_forward.2} parent=43 // pred_check_branch
        %2453 = sbr.rel (%p2451) target = $region52
      $region51: #{conv_block_forward.2} parent=43 // pred_region
        %p2454 = scmp.lt.s32.totalorder %s17, 1
        %s2455 = scalar_select %p2454, %s17, 1
        %s2456 = smul.addr %s2455, 8
        %s2457 = scalar_lea.vmem %s3, %s2456
      $region52: #{conv_block_forward.2} parent=43 // pred_fallthru
        _
      // Predicated region
      $region53: #{conv_block_forward.2} parent=43 // pred_check
        %p2458 = pneg %p139
      $region54: #{conv_block_forward.2} parent=43 // pred_check_branch
        %2460 = sbr.rel (%p2458) target = $region56
      $region55: #{conv_block_forward.2} parent=43 // pred_region
        %p2461 = scmp.lt.s32.totalorder %s17, 1
        %s2462 = scalar_select %p2461, %s17, 1
        %s2463 = smul.addr %s2462, 8
        %s2464 = scalar_lea.vmem %s4, %s2463
      $region56: #{conv_block_forward.2} parent=43 // pred_fallthru
        _
    $region44: #{conv_block_forward.2} parent=5 // pred_fallthru
      _
  $region6: #{conv_block_forward.2} parent=0 // loop_footer
    %s15 = sadd.s32 1, %s11
  $region7: #{conv_block_forward.2} parent=0 // loop_footer_branch
    %10 = sbr.rel target = $region3
  $region8: #{conv_block_forward.2} parent=0 // loop_exit
    _

</llo_original>
